<compile_context>
chip_gen: v5e
topology: v5e:2x2
jax: 0.10.0
libtpu: 0.0.40
codegen_flags: <defaults>
</compile_context>

<pallas_src>
import functools

import numpy as np
import jax
import jax.numpy as jnp
from jax.experimental import pallas as pl
from jax.experimental.pallas import tpu as pltpu

FILTER_SIZES = (3, 4, 5)


def _round_up(x, m):
    return ((x + m - 1) // m) * m


# ----------------------------------------------------------------------------
# Kernel
# ----------------------------------------------------------------------------
def cnn_kernel(x_ref, wpack_ref, bpack_ref, mask_ref, fcw_ref, fcb_ref, out_ref,
               win_ref):
    K = max(FILTER_SIZES)
    L_out, F_pad = mask_ref.shape
    TB, L_pad, E = x_ref.shape
    KE_pad = win_ref.shape[-1]

    # im2col: write the K sublane-shifted slices of x straight into the
    # lane-dense (multiple-of-256) scratch.  The tail lanes are zeroed every
    # step so uninitialized VMEM (possibly NaN/Inf as bf16) never reaches the
    # MXU, regardless of which TensorCore runs which grid step.
    for j in range(K):
        win_ref[:, :, j * E:(j + 1) * E] = x_ref[:, j:j + L_out, :]
    if KE_pad > K * E:
        win_ref[:, :, K * E:] = jnp.zeros((TB, L_out, KE_pad - K * E),
                                          dtype=win_ref.dtype)

    # All conv widths fused into one MXU matmul (256-lane contraction),
    # f32 accumulation.  Kept 3-D so Mosaic folds the leading batch dim
    # (avoids a relayout-heavy reshape).
    acc = jax.lax.dot_general(win_ref[...], wpack_ref[...],
                              (((2,), (0,)), ((), ())),
                              preferred_element_type=jnp.float32)  # [TB, L_out, F_pad]

    acc = jnp.maximum(acc + bpack_ref[...][None], 0.0)   # conv bias + ReLU (f32)
    acc = acc * mask_ref[...][None]                       # zero invalid positions
    feat = jnp.max(acc, axis=1)                           # max-over-time, [TB, F_pad]

    # TODO(synk): nn.Dropout(p=0.5) is identity in eval mode; training-mode RNG
    # mask not reproduced.
    logits = jnp.dot(feat.astype(jnp.bfloat16), fcw_ref[...],
                     preferred_element_type=jnp.float32)  # [TB, C_pad]
    out_ref[...] = logits + fcb_ref[...]


# ----------------------------------------------------------------------------
# One-time parameter packing (hoisted out of the per-call path)
# ----------------------------------------------------------------------------
def pack_params(params, L):
    """Pack per-width conv weights/biases into a lane-dense bank (numpy, once)."""
    ws = [np.asarray(params['w%d' % k]) for k in FILTER_SIZES]   # [k, E, Fk]
    bs = [np.asarray(params['b%d' % k]) for k in FILTER_SIZES]   # [Fk]
    E = ws[0].shape[1]
    Fs = [w.shape[2] for w in ws]
    F_total = int(np.sum(Fs))
    F_pad = _round_up(F_total, 128)
    K = max(FILTER_SIZES)
    KE = K * E
    KE_pad = _round_up(KE, 256)            # lane-dense / one full MXU pass
    L_out = L - min(FILTER_SIZES) + 1

    wpack = np.zeros((K, E, F_pad), np.float32)
    bpack = np.zeros((1, F_pad), np.float32)
    ksz = np.zeros((F_pad,), np.int32)     # kernel size per output column
    off = 0
    for k, w, b, Fk in zip(FILTER_SIZES, ws, bs, Fs):
        wpack[:k, :, off:off + Fk] = w     # taps >= k stay zero
        bpack[0, off:off + Fk] = b
        ksz[off:off + Fk] = k
        off += Fk
    wpack_full = np.zeros((KE_pad, F_pad), np.float32)
    wpack_full[:KE] = wpack.reshape(KE, F_pad)   # rows >= K*E stay zero

    # position p valid for kernel size k  <=>  p <= L - k  (pad cols: always 1,
    # harmless because their wpack/bpack/fcw entries are zero).
    mask = (np.arange(L_out)[:, None] <= (L - ksz)[None, :]).astype(np.float32)

    fc_w = np.asarray(params['fc_w'])      # [F_total, C]
    fc_b = np.asarray(params['fc_b'])
    C = fc_w.shape[1]
    C_pad = _round_up(C, 128)
    fcw = np.zeros((F_pad, C_pad), np.float32)
    fcw[:F_total, :C] = fc_w
    fcb = np.zeros((1, C_pad), np.float32)
    fcb[0, :C] = fc_b

    return {
        'wpack': jnp.asarray(wpack_full, jnp.bfloat16),   # [KE_pad, F_pad]
        'bpack': jnp.asarray(bpack),                      # [1, F_pad] f32
        'mask': jnp.asarray(mask),                        # [L_out, F_pad] f32
        'fcw': jnp.asarray(fcw, jnp.bfloat16),            # [F_pad, C_pad]
        'fcb': jnp.asarray(fcb),                          # [1, C_pad] f32
    }


# ----------------------------------------------------------------------------
# Per-generation tiling heuristics
# ----------------------------------------------------------------------------
def _vmem_budget_and_limit():
    try:
        cap = int(pltpu.get_tpu_info().vmem_capacity_bytes)
    except Exception:
        cap = 64 * 1024 * 1024            # conservative (v7x-sized) fallback
    budget = min(cap // 3, 40 * 1024 * 1024)        # per-step live-set budget
    limit = min((cap * 3) // 4, 96 * 1024 * 1024)   # scoped VMEM limit, w/ headroom
    return budget, limit


def _choose_batch_tile(B, L_pad, L_out, E, KE_pad, F_pad, C_pad, budget):
    per_row = (2 * L_pad * E * 2          # x tile, double-buffered, bf16
               + L_out * KE_pad * 2       # im2col scratch, bf16
               + L_out * F_pad * 4        # conv accumulator, f32
               + F_pad * 4                # pooled features
               + 2 * C_pad * 4)           # out tile, double-buffered
    tb = max(8, min(1024, (budget // per_row) // 8 * 8))
    b_pad8 = _round_up(B, 8)
    tb = min(tb, b_pad8)                  # don't pad tiny batches up to a huge tile
    if tb >= b_pad8 and b_pad8 >= 16:
        tb = _round_up(pl.cdiv(b_pad8, 2), 8)   # grid >= 2 so both v7x TCs get work
    return max(tb, 8)


# ----------------------------------------------------------------------------
# Forward
# ----------------------------------------------------------------------------
@functools.partial(jax.jit, static_argnames=("num_classes", "batch_tile"))
def cnn_forward(x_ids, emb_bf16, packed, *, num_classes, batch_tile=None):
    B, L = x_ids.shape
    E = emb_bf16.shape[1]
    K = max(FILTER_SIZES)
    KE_pad, F_pad = packed['wpack'].shape
    L_out = packed['mask'].shape[0]
    C_pad = packed['fcw'].shape[1]
    assert L_out == L - min(FILTER_SIZES) + 1, "packed params built for a different L"

    # TODO(synk): move this gather in-kernel (PrefetchScalarGridSpec ids + DMA
    # row gather) to avoid materializing [B, L, E] in HBM at production sizes.
    x_emb = jnp.take(emb_bf16, x_ids, axis=0)          # [B, L, E] bf16

    L_pad = _round_up(L_out + K - 1, 8)                 # room for the widest window
    budget, vmem_limit = _vmem_budget_and_limit()
    if batch_tile is None:
        TB = _choose_batch_tile(B, L_pad, L_out, E, KE_pad, F_pad, C_pad, budget)
    else:
        TB = batch_tile
    B_pad = _round_up(B, TB)

    x_p = jnp.pad(x_emb, ((0, B_pad - B), (0, L_pad - L), (0, 0)))

    out_full = pl.pallas_call(
        cnn_kernel,
        out_shape=jax.ShapeDtypeStruct((B_pad, C_pad), jnp.float32),
        grid=(B_pad // TB,),
        in_specs=[
            pl.BlockSpec((TB, L_pad, E), lambda i: (i, 0, 0)),     # x: tiled over batch
            pl.BlockSpec((KE_pad, F_pad), lambda i: (0, 0)),       # packed conv weight (bf16)
            pl.BlockSpec((1, F_pad), lambda i: (0, 0)),            # packed conv bias (f32)
            pl.BlockSpec((L_out, F_pad), lambda i: (0, 0)),        # valid-position mask
            pl.BlockSpec((F_pad, C_pad), lambda i: (0, 0)),        # fc weight (bf16)
            pl.BlockSpec((1, C_pad), lambda i: (0, 0)),            # fc bias (f32)
        ],
        out_specs=pl.BlockSpec((TB, C_pad), lambda i: (i, 0)),
        scratch_shapes=[pltpu.VMEM((TB, L_out, KE_pad), jnp.bfloat16)],  # im2col buffer
        compiler_params=pltpu.CompilerParams(
            dimension_semantics=("parallel",),          # shard batch tiles (v7x: 2 TCs)
            vmem_limit_bytes=vmem_limit),
    )(x_p, packed['wpack'], packed['bpack'], packed['mask'],
      packed['fcw'], packed['fcb'])

    # Padded batch rows / padded class columns are garbage and sliced off here.
    return out_full[:B, :num_classes]


# ----------------------------------------------------------------------------
# Pure-JAX reference (mirrors the PyTorch forward in eval mode, with the same
# bf16-storage / f32-accumulate rounding as the kernel).
# ----------------------------------------------------------------------------
def ref_forward(x_ids, params):
    bf = lambda a: a.astype(jnp.bfloat16).astype(jnp.float32)
    x = bf(jnp.take(params['embedding'], x_ids, axis=0))
    feats = []
    for k in FILTER_SIZES:
        w = bf(params['w%d' % k])
        b = params['b%d' % k]
        L_out = x.shape[1] - k + 1
        acc = sum(jnp.einsum('ble,ef->blf', x[:, j:j + L_out, :], w[j],
                             preferred_element_type=jnp.float32)
                  for j in range(k))
        acc = acc + b.reshape(1, 1, -1)
        feats.append(jnp.max(jax.nn.relu(acc), axis=1))
    feat = bf(jnp.concatenate(feats, axis=1))
    logits = jnp.einsum('bf,fc->bc', feat, bf(params['fc_w']),
                        preferred_element_type=jnp.float32)
    return logits + params['fc_b'].reshape(1, -1)


if __name__ == "__main__":
    key = jax.random.PRNGKey(0)
    B, L = 2, 16            # batch, sequence length (token ids)
    VOCAB, E = 50, 32       # vocab size, embed_dim
    F = 16                  # num_filters per width (same for all three)
    C = 2                   # num_classes

    keys = jax.random.split(key, 10)
    params = {
        'embedding': jax.random.normal(keys[0], (VOCAB, E), jnp.float32) * 0.1,
        # conv weights stored [k, E, F] (tap, in-channel, out-filter); this is
        # the transpose of PyTorch's Conv1d [F, E, k] but identical math.
        'w3': jax.random.normal(keys[1], (3, E, F), jnp.float32) * 0.1,
        'b3': jax.random.normal(keys[2], (F,), jnp.float32) * 0.1,
        'w4': jax.random.normal(keys[3], (4, E, F), jnp.float32) * 0.1,
        'b4': jax.random.normal(keys[4], (F,), jnp.float32) * 0.1,
        'w5': jax.random.normal(keys[5], (5, E, F), jnp.float32) * 0.1,
        'b5': jax.random.normal(keys[6], (F,), jnp.float32) * 0.1,
        # fc weight stored [sum(F), C] (= W.T of PyTorch nn.Linear).
        'fc_w': jax.random.normal(keys[7], (3 * F, C), jnp.float32) * 0.1,
        'fc_b': jax.random.normal(keys[8], (C,), jnp.float32) * 0.1,
    }
    x_ids = jax.random.randint(keys[9], (B, L), 0, VOCAB)

    # One-time "model init" work: pack weights, cast embedding table to bf16.
    packed = pack_params(params, L)
    emb_bf16 = params['embedding'].astype(jnp.bfloat16)

    out = cnn_forward(x_ids, emb_bf16, packed, num_classes=C)
    jax.block_until_ready(out)

    ref = ref_forward(x_ids, params)
    assert out.shape == (B, C)
    assert np.allclose(np.asarray(out), np.asarray(ref), atol=1e-3), "mismatch vs reference"
    print("KERNEL_OK")
</pallas_src>

<mosaic_0001>
module attributes {stable_mosaic.version = 11 : i64} {
  func.func @cnn_kernel(%arg0: i32, %arg1: memref<8x24x32xbf16, #tpu.memory_space<vmem>>, %arg2: memref<256x128xbf16, #tpu.memory_space<vmem>>, %arg3: memref<1x128xf32, #tpu.memory_space<vmem>>, %arg4: memref<14x128xf32, #tpu.memory_space<vmem>>, %arg5: memref<128x128xbf16, #tpu.memory_space<vmem>>, %arg6: memref<1x128xf32, #tpu.memory_space<vmem>>, %arg7: memref<8x128xf32, #tpu.memory_space<vmem>>, %arg8: memref<8x14x256xbf16, #tpu.memory_space<vmem>>) attributes {dimension_semantics = [#tpu.dimension_semantics<parallel>], iteration_bounds = array<i64: 1>, scalar_prefetch = 0 : i64, scratch_operands = 1 : i64, tpu.core_type = #tpu.core_type<tc>, window_params = [{transform_indices = @transform_0, window_bounds = array<i64: 8, 24, 32>}, {pipeline_mode = #tpu.pipeline_mode<synchronous>, transform_indices = @transform_1, window_bounds = array<i64: 256, 128>}, {pipeline_mode = #tpu.pipeline_mode<synchronous>, transform_indices = @transform_2, window_bounds = array<i64: 1, 128>}, {pipeline_mode = #tpu.pipeline_mode<synchronous>, transform_indices = @transform_3, window_bounds = array<i64: 14, 128>}, {pipeline_mode = #tpu.pipeline_mode<synchronous>, transform_indices = @transform_4, window_bounds = array<i64: 128, 128>}, {pipeline_mode = #tpu.pipeline_mode<synchronous>, transform_indices = @transform_5, window_bounds = array<i64: 1, 128>}, {transform_indices = @transform_6, window_bounds = array<i64: 8, 128>}]} {
    %c0 = arith.constant 0 : index
    %c0_0 = arith.constant 0 : index
    %c0_1 = arith.constant 0 : index
    %0 = vector.load %arg1[%c0, %c0_0, %c0_1] : memref<8x24x32xbf16, #tpu.memory_space<vmem>>, vector<8x14x32xbf16>
    %c0_2 = arith.constant 0 : index
    %c0_3 = arith.constant 0 : index
    %c0_4 = arith.constant 0 : index
    %1 = vector.load %arg8[%c0_2, %c0_3, %c0_4] : memref<8x14x256xbf16, #tpu.memory_space<vmem>>, vector<8x14x32xbf16>
    tpu.vector_store %arg8[%c0_2, %c0_3, %c0_4], %0 {strides = array<i32>} : memref<8x14x256xbf16, #tpu.memory_space<vmem>>, vector<8x14x32xbf16>,
    %c0_5 = arith.constant 0 : index
    %c1 = arith.constant 1 : index
    %c0_6 = arith.constant 0 : index
    %2 = vector.load %arg1[%c0_5, %c1, %c0_6] : memref<8x24x32xbf16, #tpu.memory_space<vmem>>, vector<8x14x32xbf16>
    %c0_7 = arith.constant 0 : index
    %c0_8 = arith.constant 0 : index
    %c32 = arith.constant 32 : index
    %3 = vector.load %arg8[%c0_7, %c0_8, %c32] : memref<8x14x256xbf16, #tpu.memory_space<vmem>>, vector<8x14x32xbf16>
    tpu.vector_store %arg8[%c0_7, %c0_8, %c32], %2 {strides = array<i32>} : memref<8x14x256xbf16, #tpu.memory_space<vmem>>, vector<8x14x32xbf16>,
    %c0_9 = arith.constant 0 : index
    %c2 = arith.constant 2 : index
    %c0_10 = arith.constant 0 : index
    %4 = vector.load %arg1[%c0_9, %c2, %c0_10] : memref<8x24x32xbf16, #tpu.memory_space<vmem>>, vector<8x14x32xbf16>
    %c0_11 = arith.constant 0 : index
    %c0_12 = arith.constant 0 : index
    %c64 = arith.constant 64 : index
    %5 = vector.load %arg8[%c0_11, %c0_12, %c64] : memref<8x14x256xbf16, #tpu.memory_space<vmem>>, vector<8x14x32xbf16>
    tpu.vector_store %arg8[%c0_11, %c0_12, %c64], %4 {strides = array<i32>} : memref<8x14x256xbf16, #tpu.memory_space<vmem>>, vector<8x14x32xbf16>,
    %c0_13 = arith.constant 0 : index
    %c3 = arith.constant 3 : index
    %c0_14 = arith.constant 0 : index
    %6 = vector.load %arg1[%c0_13, %c3, %c0_14] : memref<8x24x32xbf16, #tpu.memory_space<vmem>>, vector<8x14x32xbf16>
    %c0_15 = arith.constant 0 : index
    %c0_16 = arith.constant 0 : index
    %c96 = arith.constant 96 : index
    %7 = vector.load %arg8[%c0_15, %c0_16, %c96] : memref<8x14x256xbf16, #tpu.memory_space<vmem>>, vector<8x14x32xbf16>
    tpu.vector_store %arg8[%c0_15, %c0_16, %c96], %6 {strides = array<i32>} : memref<8x14x256xbf16, #tpu.memory_space<vmem>>, vector<8x14x32xbf16>,
    %c0_17 = arith.constant 0 : index
    %c4 = arith.constant 4 : index
    %c0_18 = arith.constant 0 : index
    %8 = vector.load %arg1[%c0_17, %c4, %c0_18] : memref<8x24x32xbf16, #tpu.memory_space<vmem>>, vector<8x14x32xbf16>
    %c0_19 = arith.constant 0 : index
    %c0_20 = arith.constant 0 : index
    %c128 = arith.constant 128 : index
    %9 = vector.load %arg8[%c0_19, %c0_20, %c128] : memref<8x14x256xbf16, #tpu.memory_space<vmem>>, vector<8x14x32xbf16>
    tpu.vector_store %arg8[%c0_19, %c0_20, %c128], %8 {strides = array<i32>} : memref<8x14x256xbf16, #tpu.memory_space<vmem>>, vector<8x14x32xbf16>,
    %cst = arith.constant 0.000000e+00 : bf16
    %10 = vector.broadcast %cst : bf16 to vector<8x14x96xbf16>
    %c0_21 = arith.constant 0 : index
    %c0_22 = arith.constant 0 : index
    %c160 = arith.constant 160 : index
    %11 = vector.load %arg8[%c0_21, %c0_22, %c160] : memref<8x14x256xbf16, #tpu.memory_space<vmem>>, vector<8x14x96xbf16>
    tpu.vector_store %arg8[%c0_21, %c0_22, %c160], %10 {strides = array<i32>} : memref<8x14x256xbf16, #tpu.memory_space<vmem>>, vector<8x14x96xbf16>,
    %c0_23 = arith.constant 0 : index
    %c0_24 = arith.constant 0 : index
    %c0_25 = arith.constant 0 : index
    %12 = vector.load %arg8[%c0_23, %c0_24, %c0_25] : memref<8x14x256xbf16, #tpu.memory_space<vmem>>, vector<8x14x256xbf16>
    %c0_26 = arith.constant 0 : index
    %c0_27 = arith.constant 0 : index
    %13 = vector.load %arg2[%c0_26, %c0_27] : memref<256x128xbf16, #tpu.memory_space<vmem>>, vector<256x128xbf16>
    %cst_28 = arith.constant dense<0.000000e+00> : vector<8x14x128xf32>
    %14 = tpu.matmul %12, %13, %cst_28 {dimension_numbers = #tpu.dot_dimension_numbers<[2], [0], [0, 1], [1], [0, 0, 0, 1, 1, 1], [], []>} : vector<8x14x256xbf16>, vector<256x128xbf16>, vector<8x14x128xf32> -> vector<8x14x128xf32>
    %c0_29 = arith.constant 0 : index
    %c0_30 = arith.constant 0 : index
    %15 = vector.load %arg3[%c0_29, %c0_30] : memref<1x128xf32, #tpu.memory_space<vmem>>, vector<1x128xf32>
    %16 = vector.shape_cast %15 : vector<1x128xf32> to vector<1x1x128xf32>
    %17 = vector.broadcast %16 : vector<1x1x128xf32> to vector<8x14x128xf32>
    %18 = arith.addf %14, %17 : vector<8x14x128xf32>
    %cst_31 = arith.constant 0.000000e+00 : f32
    %19 = vector.broadcast %cst_31 : f32 to vector<8x14x128xf32>
    %20 = arith.maximumf %18, %19 : vector<8x14x128xf32>
    %c0_32 = arith.constant 0 : index
    %c0_33 = arith.constant 0 : index
    %21 = vector.load %arg4[%c0_32, %c0_33] : memref<14x128xf32, #tpu.memory_space<vmem>>, vector<14x128xf32>
    %22 = vector.shape_cast %21 : vector<14x128xf32> to vector<1x14x128xf32>
    %23 = vector.broadcast %22 : vector<1x14x128xf32> to vector<8x14x128xf32>
    %24 = arith.mulf %20, %23 : vector<8x14x128xf32>
    %cst_34 = arith.constant dense<0xFF800000> : vector<8x128xf32>
    %25 = vector.multi_reduction <maximumf>, %24, %cst_34 [1] : vector<8x14x128xf32> to vector<8x128xf32>
    %26 = arith.truncf %25 : vector<8x128xf32> to vector<8x128xbf16>
    %c0_35 = arith.constant 0 : index
    %c0_36 = arith.constant 0 : index
    %27 = vector.load %arg5[%c0_35, %c0_36] : memref<128x128xbf16, #tpu.memory_space<vmem>>, vector<128x128xbf16>
    %cst_37 = arith.constant dense<0.000000e+00> : vector<8x128xf32>
    %28 = tpu.matmul %26, %27, %cst_37 {dimension_numbers = #tpu.dot_dimension_numbers<[1], [0], [0], [1], [0, 0, 1, 1], [], []>} : vector<8x128xbf16>, vector<128x128xbf16>, vector<8x128xf32> -> vector<8x128xf32>
    %c0_38 = arith.constant 0 : index
    %c0_39 = arith.constant 0 : index
    %29 = vector.load %arg6[%c0_38, %c0_39] : memref<1x128xf32, #tpu.memory_space<vmem>>, vector<1x128xf32>
    %30 = vector.broadcast %29 : vector<1x128xf32> to vector<8x128xf32>
    %31 = arith.addf %28, %30 : vector<8x128xf32>
    %c0_40 = arith.constant 0 : index
    %c0_41 = arith.constant 0 : index
    %32 = vector.load %arg7[%c0_40, %c0_41] : memref<8x128xf32, #tpu.memory_space<vmem>>, vector<8x128xf32>
    tpu.vector_store %arg7[%c0_40, %c0_41], %31 {strides = array<i32>} : memref<8x128xf32, #tpu.memory_space<vmem>>, vector<8x128xf32>,
    return
  }
  func.func @transform_0(%arg0: i32) -> (i32, i32, i32) {
    %c0_i32 = arith.constant 0 : i32
    %c0_i32_0 = arith.constant 0 : i32
    %c0_i32_1 = arith.constant 0 : i32
    return %arg0, %c0_i32, %c0_i32_0 : i32, i32, i32
  }
  func.func @transform_1(%arg0: i32) -> (i32, i32) {
    %c0_i32 = arith.constant 0 : i32
    %c0_i32_0 = arith.constant 0 : i32
    %c0_i32_1 = arith.constant 0 : i32
    return %c0_i32, %c0_i32_0 : i32, i32
  }
  func.func @transform_2(%arg0: i32) -> (i32, i32) {
    %c0_i32 = arith.constant 0 : i32
    %c0_i32_0 = arith.constant 0 : i32
    %c0_i32_1 = arith.constant 0 : i32
    return %c0_i32, %c0_i32_0 : i32, i32
  }
  func.func @transform_3(%arg0: i32) -> (i32, i32) {
    %c0_i32 = arith.constant 0 : i32
    %c0_i32_0 = arith.constant 0 : i32
    %c0_i32_1 = arith.constant 0 : i32
    return %c0_i32, %c0_i32_0 : i32, i32
  }
  func.func @transform_4(%arg0: i32) -> (i32, i32) {
    %c0_i32 = arith.constant 0 : i32
    %c0_i32_0 = arith.constant 0 : i32
    %c0_i32_1 = arith.constant 0 : i32
    return %c0_i32, %c0_i32_0 : i32, i32
  }
  func.func @transform_5(%arg0: i32) -> (i32, i32) {
    %c0_i32 = arith.constant 0 : i32
    %c0_i32_0 = arith.constant 0 : i32
    %c0_i32_1 = arith.constant 0 : i32
    return %c0_i32, %c0_i32_0 : i32, i32
  }
  func.func @transform_6(%arg0: i32) -> (i32, i32) {
    %c0_i32 = arith.constant 0 : i32
    %c0_i32_0 = arith.constant 0 : i32
    return %arg0, %c0_i32 : i32, i32
  }
}

</mosaic_0001>

<llo_original>
// kernel: cnn_forward.1
$region0: #{cnn_forward.1}
  #allocation0 [shape = 'u32[]', space=smem, size = 0x4, offset = 0x4, fixed_abs, tag = 'smem constant byte address 0x4 - core index']
  #allocation1 [shape = 'u32[72,128]{1,0:T(1,128)}', space=vmem, size = 0x9000, scoped, tag = 'internal scratch']
  #allocation2 [shape = 'bf16[8,14,256]{2,1,0:T(8,128)(2,1)}', space=vmem, size = 0x10000, scoped, tag = 'scratch operand']
  %s0 = inlined_call_operand.vmem [shape: bf16[8,24,32], index: 0, kind: input, shape index: {}]
  %s1 = inlined_call_operand.vmem [shape: bf16[256,128], index: 1, kind: input, shape index: {}]
  %s2 = inlined_call_operand.vmem [shape: f32[1,128], index: 2, kind: input, shape index: {}]
  %s3 = inlined_call_operand.vmem [shape: f32[14,128], index: 3, kind: input, shape index: {}]
  %s4 = inlined_call_operand.vmem [shape: bf16[128,128], index: 4, kind: input, shape index: {}]
  %s5 = inlined_call_operand.vmem [shape: f32[1,128], index: 5, kind: input, shape index: {}]
  %s6 = inlined_call_operand.vmem [shape: f32[8,128], index: 6, kind: output, shape index: {}]
  %s7 = sld [smem:[#allocation0]]
  $region34: #{cnn_forward.1} parent=0
    _
  %s9 = ssub.s32 1, %s7
  %s10 = scalar_select 0, %s9, %s7
  // Predicated region
  $region2: #{cnn_forward.1} parent=0 // pred_check
    _
  $region3: #{cnn_forward.1} parent=0 // pred_check_branch
    %12 = sbr.rel (0) target = $region5
  $region4: #{cnn_forward.1} parent=0 // pred_region
    _
  $region5: #{cnn_forward.1} parent=0 // pred_fallthru
    _
  // Predicated region
  $region6: #{cnn_forward.1} parent=0 // pred_check
    _
  $region7: #{cnn_forward.1} parent=0 // pred_check_branch
    %14 = sbr.rel (0) target = $region9
  $region8: #{cnn_forward.1} parent=0 // pred_region
    _
  $region9: #{cnn_forward.1} parent=0 // pred_fallthru
    _
  // Predicated region
  $region10: #{cnn_forward.1} parent=0 // pred_check
    _
  $region11: #{cnn_forward.1} parent=0 // pred_check_branch
    %16 = sbr.rel (0) target = $region13
  $region12: #{cnn_forward.1} parent=0 // pred_region
    _
  $region13: #{cnn_forward.1} parent=0 // pred_fallthru
    _
  // Predicated region
  $region14: #{cnn_forward.1} parent=0 // pred_check
    _
  $region15: #{cnn_forward.1} parent=0 // pred_check_branch
    %18 = sbr.rel (0) target = $region17
  $region16: #{cnn_forward.1} parent=0 // pred_region
    _
  $region17: #{cnn_forward.1} parent=0 // pred_fallthru
    _
  // Predicated region
  $region18: #{cnn_forward.1} parent=0 // pred_check
    _
  $region19: #{cnn_forward.1} parent=0 // pred_check_branch
    %20 = sbr.rel (0) target = $region21
  $region20: #{cnn_forward.1} parent=0 // pred_region
    _
  $region21: #{cnn_forward.1} parent=0 // pred_fallthru
    _
  // Predicated region
  $region22: #{cnn_forward.1} parent=0 // pred_check
    _
  $region23: #{cnn_forward.1} parent=0 // pred_check_branch
    %22 = sbr.rel (0) target = $region25
  $region24: #{cnn_forward.1} parent=0 // pred_region
    _
  $region25: #{cnn_forward.1} parent=0 // pred_fallthru
    _
  %v24 = vld [vmem:[%s0] sm:$0xf]
  %v25 = vld [vmem:[%s0 + $0x4] sm:$0x7]
  %v26 = vld [vmem:[%s0 + $0xc] sm:$0xf]
  %v27 = vld [vmem:[%s0 + $0x10] sm:$0x7]
  %v28 = vld [vmem:[%s0 + $0x18] sm:$0xf]
  %v29 = vld [vmem:[%s0 + $0x1c] sm:$0x7]
  %v30 = vld [vmem:[%s0 + $0x24] sm:$0xf]
  %v31 = vld [vmem:[%s0 + $0x28] sm:$0x7]
  %v32 = vld [vmem:[%s0 + $0x30] sm:$0xf]
  %v33 = vld [vmem:[%s0 + $0x34] sm:$0x7]
  %v34 = vld [vmem:[%s0 + $0x3c] sm:$0xf]
  %v35 = vld [vmem:[%s0 + $0x40] sm:$0x7]
  %v36 = vld [vmem:[%s0 + $0x48] sm:$0xf]
  %v37 = vld [vmem:[%s0 + $0x4c] sm:$0x7]
  %v38 = vld [vmem:[%s0 + $0x54] sm:$0xf]
  %v39 = vld [vmem:[%s0 + $0x58] sm:$0x7]
  %vm40 = vcmask 257024
  %41 = vst.msk [vmem:[#allocation2] sm:$0xf] %vm40, %v24
  %vm42 = vcmask 256000
  %43 = vst.msk [vmem:[#allocation2 + $0x8] sm:$0x7] %vm42, %v25
  %44 = vst.msk [vmem:[#allocation2 + $0x10] sm:$0xf] %vm40, %v26
  %45 = vst.msk [vmem:[#allocation2 + $0x18] sm:$0x7] %vm42, %v27
  %46 = vst.msk [vmem:[#allocation2 + $0x20] sm:$0xf] %vm40, %v28
  %47 = vst.msk [vmem:[#allocation2 + $0x28] sm:$0x7] %vm42, %v29
  %48 = vst.msk [vmem:[#allocation2 + $0x30] sm:$0xf] %vm40, %v30
  %49 = vst.msk [vmem:[#allocation2 + $0x38] sm:$0x7] %vm42, %v31
  %50 = vst.msk [vmem:[#allocation2 + $0x40] sm:$0xf] %vm40, %v32
  %51 = vst.msk [vmem:[#allocation2 + $0x48] sm:$0x7] %vm42, %v33
  %52 = vst.msk [vmem:[#allocation2 + $0x50] sm:$0xf] %vm40, %v34
  %53 = vst.msk [vmem:[#allocation2 + $0x58] sm:$0x7] %vm42, %v35
  %54 = vst.msk [vmem:[#allocation2 + $0x60] sm:$0xf] %vm40, %v36
  %55 = vst.msk [vmem:[#allocation2 + $0x68] sm:$0x7] %vm42, %v37
  %56 = vst.msk [vmem:[#allocation2 + $0x70] sm:$0xf] %vm40, %v38
  %57 = vst.msk [vmem:[#allocation2 + $0x78] sm:$0x7] %vm42, %v39
  %v58 = vld [vmem:[%s0] sm:$0xf]
  %v59 = vld [vmem:[%s0 + $0x4] sm:$0xf]
  %v60 = vld [vmem:[%s0 + $0xc] sm:$0xf]
  %v61 = vld [vmem:[%s0 + $0x10] sm:$0xf]
  %v62 = vld [vmem:[%s0 + $0x18] sm:$0xf]
  %v63 = vld [vmem:[%s0 + $0x1c] sm:$0xf]
  %v64 = vld [vmem:[%s0 + $0x24] sm:$0xf]
  %v65 = vld [vmem:[%s0 + $0x28] sm:$0xf]
  %v66 = vld [vmem:[%s0 + $0x30] sm:$0xf]
  %v67 = vld [vmem:[%s0 + $0x34] sm:$0xf]
  %v68 = vld [vmem:[%s0 + $0x3c] sm:$0xf]
  %v69 = vld [vmem:[%s0 + $0x40] sm:$0xf]
  %v70 = vld [vmem:[%s0 + $0x48] sm:$0xf]
  %v71 = vld [vmem:[%s0 + $0x4c] sm:$0xf]
  %v72 = vld [vmem:[%s0 + $0x54] sm:$0xf]
  %v73 = vld [vmem:[%s0 + $0x58] sm:$0xf]
  %vm74 = vsmask.f32 3328
  %vm75 = vsmask.f32 7440
  %vm76 = vmor %vm74, %vm75
  %v78 = vshrl.u32 %v58, 16
  %v80 = vrot.slane %v78, 4
  %v81 = vshll.u32 %v58, 16
  %v83 = vrot.slane %v81, 5
  %v84 = vor.u32 %v80, %v83
  %v85 = vrot.slane %v84, 4
  %v87 = vshll.u32 %v59, 16
  %v89 = vrot.slane %v87, 5
  %v90 = vsel %vm76, %v85, %v89
  %v91 = vshrl.u32 %v59, 16
  %v93 = vrot.slane %v91, 4
  %v94 = vor.u32 %v93, %v89
  %v95 = vrot.slane %v94, 4
  %v97 = vshrl.u32 %v60, 16
  %v99 = vrot.slane %v97, 4
  %v100 = vshll.u32 %v60, 16
  %v102 = vrot.slane %v100, 5
  %v103 = vor.u32 %v99, %v102
  %v104 = vrot.slane %v103, 4
  %v106 = vshll.u32 %v61, 16
  %v108 = vrot.slane %v106, 5
  %v109 = vsel %vm76, %v104, %v108
  %v110 = vshrl.u32 %v61, 16
  %v112 = vrot.slane %v110, 4
  %v113 = vor.u32 %v112, %v108
  %v114 = vrot.slane %v113, 4
  %v116 = vshrl.u32 %v62, 16
  %v118 = vrot.slane %v116, 4
  %v119 = vshll.u32 %v62, 16
  %v121 = vrot.slane %v119, 5
  %v122 = vor.u32 %v118, %v121
  %v123 = vrot.slane %v122, 4
  %v125 = vshll.u32 %v63, 16
  %v127 = vrot.slane %v125, 5
  %v128 = vsel %vm76, %v123, %v127
  %v129 = vshrl.u32 %v63, 16
  %v131 = vrot.slane %v129, 4
  %v132 = vor.u32 %v131, %v127
  %v133 = vrot.slane %v132, 4
  %v135 = vshrl.u32 %v64, 16
  %v137 = vrot.slane %v135, 4
  %v138 = vshll.u32 %v64, 16
  %v140 = vrot.slane %v138, 5
  %v141 = vor.u32 %v137, %v140
  %v142 = vrot.slane %v141, 4
  %v144 = vshll.u32 %v65, 16
  %v146 = vrot.slane %v144, 5
  %v147 = vsel %vm76, %v142, %v146
  %v148 = vshrl.u32 %v65, 16
  %v150 = vrot.slane %v148, 4
  %v151 = vor.u32 %v150, %v146
  %v152 = vrot.slane %v151, 4
  %v154 = vshrl.u32 %v66, 16
  %v156 = vrot.slane %v154, 4
  %v157 = vshll.u32 %v66, 16
  %v159 = vrot.slane %v157, 5
  %v160 = vor.u32 %v156, %v159
  %v161 = vrot.slane %v160, 4
  %v163 = vshll.u32 %v67, 16
  %v165 = vrot.slane %v163, 5
  %v166 = vsel %vm76, %v161, %v165
  %v167 = vshrl.u32 %v67, 16
  %v169 = vrot.slane %v167, 4
  %v170 = vor.u32 %v169, %v165
  %v171 = vrot.slane %v170, 4
  %v173 = vshrl.u32 %v68, 16
  %v175 = vrot.slane %v173, 4
  %v176 = vshll.u32 %v68, 16
  %v178 = vrot.slane %v176, 5
  %v179 = vor.u32 %v175, %v178
  %v180 = vrot.slane %v179, 4
  %v182 = vshll.u32 %v69, 16
  %v184 = vrot.slane %v182, 5
  %v185 = vsel %vm76, %v180, %v184
  %v186 = vshrl.u32 %v69, 16
  %v188 = vrot.slane %v186, 4
  %v189 = vor.u32 %v188, %v184
  %v190 = vrot.slane %v189, 4
  %v192 = vshrl.u32 %v70, 16
  %v194 = vrot.slane %v192, 4
  %v195 = vshll.u32 %v70, 16
  %v197 = vrot.slane %v195, 5
  %v198 = vor.u32 %v194, %v197
  %v199 = vrot.slane %v198, 4
  %v201 = vshll.u32 %v71, 16
  %v203 = vrot.slane %v201, 5
  %v204 = vsel %vm76, %v199, %v203
  %v205 = vshrl.u32 %v71, 16
  %v207 = vrot.slane %v205, 4
  %v208 = vor.u32 %v207, %v203
  %v209 = vrot.slane %v208, 4
  %v211 = vshrl.u32 %v72, 16
  %v213 = vrot.slane %v211, 4
  %v214 = vshll.u32 %v72, 16
  %v216 = vrot.slane %v214, 5
  %v217 = vor.u32 %v213, %v216
  %v218 = vrot.slane %v217, 4
  %v220 = vshll.u32 %v73, 16
  %v222 = vrot.slane %v220, 5
  %v223 = vsel %vm76, %v218, %v222
  %v224 = vshrl.u32 %v73, 16
  %v226 = vrot.slane %v224, 4
  %v227 = vor.u32 %v226, %v222
  %v228 = vrot.slane %v227, 4
  %229 = vrot.lane.b32.xlu0 %v90, 32
  %v230 = vpop.permute.xlu0 %229
  %231 = vrot.lane.b32.xlu0 %v95, 32
  %v232 = vpop.permute.xlu0 %231
  %233 = vrot.lane.b32.xlu0 %v109, 32
  %v234 = vpop.permute.xlu0 %233
  %235 = vrot.lane.b32.xlu0 %v114, 32
  %v236 = vpop.permute.xlu0 %235
  %237 = vrot.lane.b32.xlu0 %v128, 32
  %v238 = vpop.permute.xlu0 %237
  %239 = vrot.lane.b32.xlu0 %v133, 32
  %v240 = vpop.permute.xlu0 %239
  %241 = vrot.lane.b32.xlu0 %v147, 32
  %v242 = vpop.permute.xlu0 %241
  %243 = vrot.lane.b32.xlu0 %v152, 32
  %v244 = vpop.permute.xlu0 %243
  %245 = vrot.lane.b32.xlu0 %v166, 32
  %v246 = vpop.permute.xlu0 %245
  %247 = vrot.lane.b32.xlu0 %v171, 32
  %v248 = vpop.permute.xlu0 %247
  %249 = vrot.lane.b32.xlu0 %v185, 32
  %v250 = vpop.permute.xlu0 %249
  %251 = vrot.lane.b32.xlu0 %v190, 32
  %v252 = vpop.permute.xlu0 %251
  %253 = vrot.lane.b32.xlu0 %v204, 32
  %v254 = vpop.permute.xlu0 %253
  %255 = vrot.lane.b32.xlu0 %v209, 32
  %v256 = vpop.permute.xlu0 %255
  %257 = vrot.lane.b32.xlu0 %v223, 32
  %v258 = vpop.permute.xlu0 %257
  %259 = vrot.lane.b32.xlu0 %v228, 32
  %v260 = vpop.permute.xlu0 %259
  %vm277 = vcmask 519424
  %278 = vst.msk [vmem:[#allocation2] sm:$0xf] %vm277, %v230
  %vm279 = vcmask 518400
  %280 = vst.msk [vmem:[#allocation2 + $0x8] sm:$0x7] %vm279, %v232
  %281 = vst.msk [vmem:[#allocation2 + $0x10] sm:$0xf] %vm277, %v234
  %282 = vst.msk [vmem:[#allocation2 + $0x18] sm:$0x7] %vm279, %v236
  %283 = vst.msk [vmem:[#allocation2 + $0x20] sm:$0xf] %vm277, %v238
  %284 = vst.msk [vmem:[#allocation2 + $0x28] sm:$0x7] %vm279, %v240
  %285 = vst.msk [vmem:[#allocation2 + $0x30] sm:$0xf] %vm277, %v242
  %286 = vst.msk [vmem:[#allocation2 + $0x38] sm:$0x7] %vm279, %v244
  %287 = vst.msk [vmem:[#allocation2 + $0x40] sm:$0xf] %vm277, %v246
  %288 = vst.msk [vmem:[#allocation2 + $0x48] sm:$0x7] %vm279, %v248
  %289 = vst.msk [vmem:[#allocation2 + $0x50] sm:$0xf] %vm277, %v250
  %290 = vst.msk [vmem:[#allocation2 + $0x58] sm:$0x7] %vm279, %v252
  %291 = vst.msk [vmem:[#allocation2 + $0x60] sm:$0xf] %vm277, %v254
  %292 = vst.msk [vmem:[#allocation2 + $0x68] sm:$0x7] %vm279, %v256
  %293 = vst.msk [vmem:[#allocation2 + $0x70] sm:$0xf] %vm277, %v258
  %294 = vst.msk [vmem:[#allocation2 + $0x78] sm:$0x7] %vm279, %v260
  %v295 = vld [vmem:[%s0] sm:$0xe]
  %v296 = vld [vmem:[%s0 + $0x4] sm:$0xf]
  %v297 = vld [vmem:[%s0 + $0xc] sm:$0xe]
  %v298 = vld [vmem:[%s0 + $0x10] sm:$0xf]
  %v299 = vld [vmem:[%s0 + $0x18] sm:$0xe]
  %v300 = vld [vmem:[%s0 + $0x1c] sm:$0xf]
  %v301 = vld [vmem:[%s0 + $0x24] sm:$0xe]
  %v302 = vld [vmem:[%s0 + $0x28] sm:$0xf]
  %v303 = vld [vmem:[%s0 + $0x30] sm:$0xe]
  %v304 = vld [vmem:[%s0 + $0x34] sm:$0xf]
  %v305 = vld [vmem:[%s0 + $0x3c] sm:$0xe]
  %v306 = vld [vmem:[%s0 + $0x40] sm:$0xf]
  %v307 = vld [vmem:[%s0 + $0x48] sm:$0xe]
  %v308 = vld [vmem:[%s0 + $0x4c] sm:$0xf]
  %v309 = vld [vmem:[%s0 + $0x54] sm:$0xe]
  %v310 = vld [vmem:[%s0 + $0x58] sm:$0xf]
  %vm327 = vcmask 1042432
  %vm328 = vcmask 1046532
  %vm329 = vmor %vm327, %vm328
  %v330 = vrot.slane %v295, 5
  %v331 = vrot.slane %v330, 4
  %v332 = vrot.slane %v296, 5
  %v333 = vsel %vm329, %v331, %v332
  %v334 = vrot.slane %v332, 4
  %v335 = vrot.slane %v297, 5
  %v336 = vrot.slane %v335, 4
  %v337 = vrot.slane %v298, 5
  %v338 = vsel %vm329, %v336, %v337
  %v339 = vrot.slane %v337, 4
  %v340 = vrot.slane %v299, 5
  %v341 = vrot.slane %v340, 4
  %v342 = vrot.slane %v300, 5
  %v343 = vsel %vm329, %v341, %v342
  %v344 = vrot.slane %v342, 4
  %v345 = vrot.slane %v301, 5
  %v346 = vrot.slane %v345, 4
  %v347 = vrot.slane %v302, 5
  %v348 = vsel %vm329, %v346, %v347
  %v349 = vrot.slane %v347, 4
  %v350 = vrot.slane %v303, 5
  %v351 = vrot.slane %v350, 4
  %v352 = vrot.slane %v304, 5
  %v353 = vsel %vm329, %v351, %v352
  %v354 = vrot.slane %v352, 4
  %v355 = vrot.slane %v305, 5
  %v356 = vrot.slane %v355, 4
  %v357 = vrot.slane %v306, 5
  %v358 = vsel %vm329, %v356, %v357
  %v359 = vrot.slane %v357, 4
  %v360 = vrot.slane %v307, 5
  %v361 = vrot.slane %v360, 4
  %v362 = vrot.slane %v308, 5
  %v363 = vsel %vm329, %v361, %v362
  %v364 = vrot.slane %v362, 4
  %v365 = vrot.slane %v309, 5
  %v366 = vrot.slane %v365, 4
  %v367 = vrot.slane %v310, 5
  %v368 = vsel %vm329, %v366, %v367
  %v369 = vrot.slane %v367, 4
  %370 = vrot.lane.b32.xlu0 %v333, 64
  %v371 = vpop.permute.xlu0 %370
  %372 = vrot.lane.b32.xlu0 %v334, 64
  %v373 = vpop.permute.xlu0 %372
  %374 = vrot.lane.b32.xlu0 %v338, 64
  %v375 = vpop.permute.xlu0 %374
  %376 = vrot.lane.b32.xlu0 %v339, 64
  %v377 = vpop.permute.xlu0 %376
  %378 = vrot.lane.b32.xlu0 %v343, 64
  %v379 = vpop.permute.xlu0 %378
  %380 = vrot.lane.b32.xlu0 %v344, 64
  %v381 = vpop.permute.xlu0 %380
  %382 = vrot.lane.b32.xlu0 %v348, 64
  %v383 = vpop.permute.xlu0 %382
  %384 = vrot.lane.b32.xlu0 %v349, 64
  %v385 = vpop.permute.xlu0 %384
  %386 = vrot.lane.b32.xlu0 %v353, 64
  %v387 = vpop.permute.xlu0 %386
  %388 = vrot.lane.b32.xlu0 %v354, 64
  %v389 = vpop.permute.xlu0 %388
  %390 = vrot.lane.b32.xlu0 %v358, 64
  %v391 = vpop.permute.xlu0 %390
  %392 = vrot.lane.b32.xlu0 %v359, 64
  %v393 = vpop.permute.xlu0 %392
  %394 = vrot.lane.b32.xlu0 %v363, 64
  %v395 = vpop.permute.xlu0 %394
  %396 = vrot.lane.b32.xlu0 %v364, 64
  %v397 = vpop.permute.xlu0 %396
  %398 = vrot.lane.b32.xlu0 %v368, 64
  %v399 = vpop.permute.xlu0 %398
  %400 = vrot.lane.b32.xlu0 %v369, 64
  %v401 = vpop.permute.xlu0 %400
  %vm418 = vcmask 781824
  %419 = vst.msk [vmem:[#allocation2] sm:$0xf] %vm418, %v371
  %vm420 = vcmask 780800
  %421 = vst.msk [vmem:[#allocation2 + $0x8] sm:$0x7] %vm420, %v373
  %422 = vst.msk [vmem:[#allocation2 + $0x10] sm:$0xf] %vm418, %v375
  %423 = vst.msk [vmem:[#allocation2 + $0x18] sm:$0x7] %vm420, %v377
  %424 = vst.msk [vmem:[#allocation2 + $0x20] sm:$0xf] %vm418, %v379
  %425 = vst.msk [vmem:[#allocation2 + $0x28] sm:$0x7] %vm420, %v381
  %426 = vst.msk [vmem:[#allocation2 + $0x30] sm:$0xf] %vm418, %v383
  %427 = vst.msk [vmem:[#allocation2 + $0x38] sm:$0x7] %vm420, %v385
  %428 = vst.msk [vmem:[#allocation2 + $0x40] sm:$0xf] %vm418, %v387
  %429 = vst.msk [vmem:[#allocation2 + $0x48] sm:$0x7] %vm420, %v389
  %430 = vst.msk [vmem:[#allocation2 + $0x50] sm:$0xf] %vm418, %v391
  %431 = vst.msk [vmem:[#allocation2 + $0x58] sm:$0x7] %vm420, %v393
  %432 = vst.msk [vmem:[#allocation2 + $0x60] sm:$0xf] %vm418, %v395
  %433 = vst.msk [vmem:[#allocation2 + $0x68] sm:$0x7] %vm420, %v397
  %434 = vst.msk [vmem:[#allocation2 + $0x70] sm:$0xf] %vm418, %v399
  %435 = vst.msk [vmem:[#allocation2 + $0x78] sm:$0x7] %vm420, %v401
  %v436 = vld [vmem:[%s0] sm:$0xe]
  %v437 = vld [vmem:[%s0 + $0x4] sm:$0xf]
  %v438 = vld [vmem:[%s0 + $0x8] sm:$0x1]
  %v439 = vld [vmem:[%s0 + $0xc] sm:$0xe]
  %v440 = vld [vmem:[%s0 + $0x10] sm:$0xf]
  %v441 = vld [vmem:[%s0 + $0x14] sm:$0x1]
  %v442 = vld [vmem:[%s0 + $0x18] sm:$0xe]
  %v443 = vld [vmem:[%s0 + $0x1c] sm:$0xf]
  %v444 = vld [vmem:[%s0 + $0x20] sm:$0x1]
  %v445 = vld [vmem:[%s0 + $0x24] sm:$0xe]
  %v446 = vld [vmem:[%s0 + $0x28] sm:$0xf]
  %v447 = vld [vmem:[%s0 + $0x2c] sm:$0x1]
  %v448 = vld [vmem:[%s0 + $0x30] sm:$0xe]
  %v449 = vld [vmem:[%s0 + $0x34] sm:$0xf]
  %v450 = vld [vmem:[%s0 + $0x38] sm:$0x1]
  %v451 = vld [vmem:[%s0 + $0x3c] sm:$0xe]
  %v452 = vld [vmem:[%s0 + $0x40] sm:$0xf]
  %v453 = vld [vmem:[%s0 + $0x44] sm:$0x1]
  %v454 = vld [vmem:[%s0 + $0x48] sm:$0xe]
  %v455 = vld [vmem:[%s0 + $0x4c] sm:$0xf]
  %v456 = vld [vmem:[%s0 + $0x50] sm:$0x1]
  %v457 = vld [vmem:[%s0 + $0x54] sm:$0xe]
  %v458 = vld [vmem:[%s0 + $0x58] sm:$0xf]
  %v459 = vld [vmem:[%s0 + $0x5c] sm:$0x1]
  %vm460 = vsmask.f32 2304
  %vm461 = vsmask.f32 6416
  %vm462 = vmor %vm460, %vm461
  %v464 = vshrl.u32 %v436, 16
  %v466 = vrot.slane %v464, 5
  %v467 = vshll.u32 %v436, 16
  %v469 = vrot.slane %v467, 6
  %v470 = vor.u32 %v466, %v469
  %v471 = vrot.slane %v470, 4
  %v473 = vshrl.u32 %v437, 16
  %v475 = vrot.slane %v473, 5
  %v476 = vshll.u32 %v437, 16
  %v478 = vrot.slane %v476, 6
  %v479 = vor.u32 %v475, %v478
  %v480 = vsel %vm462, %v471, %v479
  %v481 = vrot.slane %v479, 4
  %v483 = vshll.u32 %v438, 16
  %v485 = vrot.slane %v483, 6
  %v486 = vsel %vm462, %v481, %v485
  %v488 = vshrl.u32 %v439, 16
  %v490 = vrot.slane %v488, 5
  %v491 = vshll.u32 %v439, 16
  %v493 = vrot.slane %v491, 6
  %v494 = vor.u32 %v490, %v493
  %v495 = vrot.slane %v494, 4
  %v497 = vshrl.u32 %v440, 16
  %v499 = vrot.slane %v497, 5
  %v500 = vshll.u32 %v440, 16
  %v502 = vrot.slane %v500, 6
  %v503 = vor.u32 %v499, %v502
  %v504 = vsel %vm462, %v495, %v503
  %v505 = vrot.slane %v503, 4
  %v507 = vshll.u32 %v441, 16
  %v509 = vrot.slane %v507, 6
  %v510 = vsel %vm462, %v505, %v509
  %v512 = vshrl.u32 %v442, 16
  %v514 = vrot.slane %v512, 5
  %v515 = vshll.u32 %v442, 16
  %v517 = vrot.slane %v515, 6
  %v518 = vor.u32 %v514, %v517
  %v519 = vrot.slane %v518, 4
  %v521 = vshrl.u32 %v443, 16
  %v523 = vrot.slane %v521, 5
  %v524 = vshll.u32 %v443, 16
  %v526 = vrot.slane %v524, 6
  %v527 = vor.u32 %v523, %v526
  %v528 = vsel %vm462, %v519, %v527
  %v529 = vrot.slane %v527, 4
  %v531 = vshll.u32 %v444, 16
  %v533 = vrot.slane %v531, 6
  %v534 = vsel %vm462, %v529, %v533
  %v536 = vshrl.u32 %v445, 16
  %v538 = vrot.slane %v536, 5
  %v539 = vshll.u32 %v445, 16
  %v541 = vrot.slane %v539, 6
  %v542 = vor.u32 %v538, %v541
  %v543 = vrot.slane %v542, 4
  %v545 = vshrl.u32 %v446, 16
  %v547 = vrot.slane %v545, 5
  %v548 = vshll.u32 %v446, 16
  %v550 = vrot.slane %v548, 6
  %v551 = vor.u32 %v547, %v550
  %v552 = vsel %vm462, %v543, %v551
  %v553 = vrot.slane %v551, 4
  %v555 = vshll.u32 %v447, 16
  %v557 = vrot.slane %v555, 6
  %v558 = vsel %vm462, %v553, %v557
  %v560 = vshrl.u32 %v448, 16
  %v562 = vrot.slane %v560, 5
  %v563 = vshll.u32 %v448, 16
  %v565 = vrot.slane %v563, 6
  %v566 = vor.u32 %v562, %v565
  %v567 = vrot.slane %v566, 4
  %v569 = vshrl.u32 %v449, 16
  %v571 = vrot.slane %v569, 5
  %v572 = vshll.u32 %v449, 16
  %v574 = vrot.slane %v572, 6
  %v575 = vor.u32 %v571, %v574
  %v576 = vsel %vm462, %v567, %v575
  %v577 = vrot.slane %v575, 4
  %v579 = vshll.u32 %v450, 16
  %v581 = vrot.slane %v579, 6
  %v582 = vsel %vm462, %v577, %v581
  %v584 = vshrl.u32 %v451, 16
  %v586 = vrot.slane %v584, 5
  %v587 = vshll.u32 %v451, 16
  %v589 = vrot.slane %v587, 6
  %v590 = vor.u32 %v586, %v589
  %v591 = vrot.slane %v590, 4
  %v593 = vshrl.u32 %v452, 16
  %v595 = vrot.slane %v593, 5
  %v596 = vshll.u32 %v452, 16
  %v598 = vrot.slane %v596, 6
  %v599 = vor.u32 %v595, %v598
  %v600 = vsel %vm462, %v591, %v599
  %v601 = vrot.slane %v599, 4
  %v603 = vshll.u32 %v453, 16
  %v605 = vrot.slane %v603, 6
  %v606 = vsel %vm462, %v601, %v605
  %v608 = vshrl.u32 %v454, 16
  %v610 = vrot.slane %v608, 5
  %v611 = vshll.u32 %v454, 16
  %v613 = vrot.slane %v611, 6
  %v614 = vor.u32 %v610, %v613
  %v615 = vrot.slane %v614, 4
  %v617 = vshrl.u32 %v455, 16
  %v619 = vrot.slane %v617, 5
  %v620 = vshll.u32 %v455, 16
  %v622 = vrot.slane %v620, 6
  %v623 = vor.u32 %v619, %v622
  %v624 = vsel %vm462, %v615, %v623
  %v625 = vrot.slane %v623, 4
  %v627 = vshll.u32 %v456, 16
  %v629 = vrot.slane %v627, 6
  %v630 = vsel %vm462, %v625, %v629
  %v632 = vshrl.u32 %v457, 16
  %v634 = vrot.slane %v632, 5
  %v635 = vshll.u32 %v457, 16
  %v637 = vrot.slane %v635, 6
  %v638 = vor.u32 %v634, %v637
  %v639 = vrot.slane %v638, 4
  %v641 = vshrl.u32 %v458, 16
  %v643 = vrot.slane %v641, 5
  %v644 = vshll.u32 %v458, 16
  %v646 = vrot.slane %v644, 6
  %v647 = vor.u32 %v643, %v646
  %v648 = vsel %vm462, %v639, %v647
  %v649 = vrot.slane %v647, 4
  %v651 = vshll.u32 %v459, 16
  %v653 = vrot.slane %v651, 6
  %v654 = vsel %vm462, %v649, %v653
  %655 = vrot.lane.b32.xlu0 %v480, 96
  %v656 = vpop.permute.xlu0 %655
  %657 = vrot.lane.b32.xlu0 %v486, 96
  %v658 = vpop.permute.xlu0 %657
  %659 = vrot.lane.b32.xlu0 %v504, 96
  %v660 = vpop.permute.xlu0 %659
  %661 = vrot.lane.b32.xlu0 %v510, 96
  %v662 = vpop.permute.xlu0 %661
  %663 = vrot.lane.b32.xlu0 %v528, 96
  %v664 = vpop.permute.xlu0 %663
  %665 = vrot.lane.b32.xlu0 %v534, 96
  %v666 = vpop.permute.xlu0 %665
  %667 = vrot.lane.b32.xlu0 %v552, 96
  %v668 = vpop.permute.xlu0 %667
  %669 = vrot.lane.b32.xlu0 %v558, 96
  %v670 = vpop.permute.xlu0 %669
  %671 = vrot.lane.b32.xlu0 %v576, 96
  %v672 = vpop.permute.xlu0 %671
  %673 = vrot.lane.b32.xlu0 %v582, 96
  %v674 = vpop.permute.xlu0 %673
  %675 = vrot.lane.b32.xlu0 %v600, 96
  %v676 = vpop.permute.xlu0 %675
  %677 = vrot.lane.b32.xlu0 %v606, 96
  %v678 = vpop.permute.xlu0 %677
  %679 = vrot.lane.b32.xlu0 %v624, 96
  %v680 = vpop.permute.xlu0 %679
  %681 = vrot.lane.b32.xlu0 %v630, 96
  %v682 = vpop.permute.xlu0 %681
  %683 = vrot.lane.b32.xlu0 %v648, 96
  %v684 = vpop.permute.xlu0 %683
  %685 = vrot.lane.b32.xlu0 %v654, 96
  %v686 = vpop.permute.xlu0 %685
  %vm703 = vcmask 1044224
  %704 = vst.msk [vmem:[#allocation2] sm:$0xf] %vm703, %v656
  %vm705 = vcmask 1043200
  %706 = vst.msk [vmem:[#allocation2 + $0x8] sm:$0x7] %vm705, %v658
  %707 = vst.msk [vmem:[#allocation2 + $0x10] sm:$0xf] %vm703, %v660
  %708 = vst.msk [vmem:[#allocation2 + $0x18] sm:$0x7] %vm705, %v662
  %709 = vst.msk [vmem:[#allocation2 + $0x20] sm:$0xf] %vm703, %v664
  %710 = vst.msk [vmem:[#allocation2 + $0x28] sm:$0x7] %vm705, %v666
  %711 = vst.msk [vmem:[#allocation2 + $0x30] sm:$0xf] %vm703, %v668
  %712 = vst.msk [vmem:[#allocation2 + $0x38] sm:$0x7] %vm705, %v670
  %713 = vst.msk [vmem:[#allocation2 + $0x40] sm:$0xf] %vm703, %v672
  %714 = vst.msk [vmem:[#allocation2 + $0x48] sm:$0x7] %vm705, %v674
  %715 = vst.msk [vmem:[#allocation2 + $0x50] sm:$0xf] %vm703, %v676
  %716 = vst.msk [vmem:[#allocation2 + $0x58] sm:$0x7] %vm705, %v678
  %717 = vst.msk [vmem:[#allocation2 + $0x60] sm:$0xf] %vm703, %v680
  %718 = vst.msk [vmem:[#allocation2 + $0x68] sm:$0x7] %vm705, %v682
  %719 = vst.msk [vmem:[#allocation2 + $0x70] sm:$0xf] %vm703, %v684
  %720 = vst.msk [vmem:[#allocation2 + $0x78] sm:$0x7] %vm705, %v686
  %v721 = vld [vmem:[%s0] sm:$0xc]
  %v722 = vld [vmem:[%s0 + $0x4] sm:$0xf]
  %v723 = vld [vmem:[%s0 + $0x8] sm:$0x1]
  %v724 = vld [vmem:[%s0 + $0xc] sm:$0xc]
  %v725 = vld [vmem:[%s0 + $0x10] sm:$0xf]
  %v726 = vld [vmem:[%s0 + $0x14] sm:$0x1]
  %v727 = vld [vmem:[%s0 + $0x18] sm:$0xc]
  %v728 = vld [vmem:[%s0 + $0x1c] sm:$0xf]
  %v729 = vld [vmem:[%s0 + $0x20] sm:$0x1]
  %v730 = vld [vmem:[%s0 + $0x24] sm:$0xc]
  %v731 = vld [vmem:[%s0 + $0x28] sm:$0xf]
  %v732 = vld [vmem:[%s0 + $0x2c] sm:$0x1]
  %v733 = vld [vmem:[%s0 + $0x30] sm:$0xc]
  %v734 = vld [vmem:[%s0 + $0x34] sm:$0xf]
  %v735 = vld [vmem:[%s0 + $0x38] sm:$0x1]
  %v736 = vld [vmem:[%s0 + $0x3c] sm:$0xc]
  %v737 = vld [vmem:[%s0 + $0x40] sm:$0xf]
  %v738 = vld [vmem:[%s0 + $0x44] sm:$0x1]
  %v739 = vld [vmem:[%s0 + $0x48] sm:$0xc]
  %v740 = vld [vmem:[%s0 + $0x4c] sm:$0xf]
  %v741 = vld [vmem:[%s0 + $0x50] sm:$0x1]
  %v742 = vld [vmem:[%s0 + $0x54] sm:$0xc]
  %v743 = vld [vmem:[%s0 + $0x58] sm:$0xf]
  %v744 = vld [vmem:[%s0 + $0x5c] sm:$0x1]
  %vm769 = vcmask 1041408
  %vm770 = vcmask 1045508
  %vm771 = vmor %vm769, %vm770
  %v772 = vrot.slane %v721, 6
  %v773 = vrot.slane %v772, 4
  %v774 = vrot.slane %v722, 6
  %v775 = vsel %vm771, %v773, %v774
  %v776 = vrot.slane %v774, 4
  %v777 = vrot.slane %v723, 6
  %v778 = vsel %vm771, %v776, %v777
  %v779 = vrot.slane %v724, 6
  %v780 = vrot.slane %v779, 4
  %v781 = vrot.slane %v725, 6
  %v782 = vsel %vm771, %v780, %v781
  %v783 = vrot.slane %v781, 4
  %v784 = vrot.slane %v726, 6
  %v785 = vsel %vm771, %v783, %v784
  %v786 = vrot.slane %v727, 6
  %v787 = vrot.slane %v786, 4
  %v788 = vrot.slane %v728, 6
  %v789 = vsel %vm771, %v787, %v788
  %v790 = vrot.slane %v788, 4
  %v791 = vrot.slane %v729, 6
  %v792 = vsel %vm771, %v790, %v791
  %v793 = vrot.slane %v730, 6
  %v794 = vrot.slane %v793, 4
  %v795 = vrot.slane %v731, 6
  %v796 = vsel %vm771, %v794, %v795
  %v797 = vrot.slane %v795, 4
  %v798 = vrot.slane %v732, 6
  %v799 = vsel %vm771, %v797, %v798
  %v800 = vrot.slane %v733, 6
  %v801 = vrot.slane %v800, 4
  %v802 = vrot.slane %v734, 6
  %v803 = vsel %vm771, %v801, %v802
  %v804 = vrot.slane %v802, 4
  %v805 = vrot.slane %v735, 6
  %v806 = vsel %vm771, %v804, %v805
  %v807 = vrot.slane %v736, 6
  %v808 = vrot.slane %v807, 4
  %v809 = vrot.slane %v737, 6
  %v810 = vsel %vm771, %v808, %v809
  %v811 = vrot.slane %v809, 4
  %v812 = vrot.slane %v738, 6
  %v813 = vsel %vm771, %v811, %v812
  %v814 = vrot.slane %v739, 6
  %v815 = vrot.slane %v814, 4
  %v816 = vrot.slane %v740, 6
  %v817 = vsel %vm771, %v815, %v816
  %v818 = vrot.slane %v816, 4
  %v819 = vrot.slane %v741, 6
  %v820 = vsel %vm771, %v818, %v819
  %v821 = vrot.slane %v742, 6
  %v822 = vrot.slane %v821, 4
  %v823 = vrot.slane %v743, 6
  %v824 = vsel %vm771, %v822, %v823
  %v825 = vrot.slane %v823, 4
  %v826 = vrot.slane %v744, 6
  %v827 = vsel %vm771, %v825, %v826
  %844 = vst.msk [vmem:[#allocation2 + $0x4] sm:$0xf] %vm40, %v775
  %845 = vst.msk [vmem:[#allocation2 + $0xc] sm:$0x7] %vm42, %v778
  %846 = vst.msk [vmem:[#allocation2 + $0x14] sm:$0xf] %vm40, %v782
  %847 = vst.msk [vmem:[#allocation2 + $0x1c] sm:$0x7] %vm42, %v785
  %848 = vst.msk [vmem:[#allocation2 + $0x24] sm:$0xf] %vm40, %v789
  %849 = vst.msk [vmem:[#allocation2 + $0x2c] sm:$0x7] %vm42, %v792
  %850 = vst.msk [vmem:[#allocation2 + $0x34] sm:$0xf] %vm40, %v796
  %851 = vst.msk [vmem:[#allocation2 + $0x3c] sm:$0x7] %vm42, %v799
  %852 = vst.msk [vmem:[#allocation2 + $0x44] sm:$0xf] %vm40, %v803
  %853 = vst.msk [vmem:[#allocation2 + $0x4c] sm:$0x7] %vm42, %v806
  %854 = vst.msk [vmem:[#allocation2 + $0x54] sm:$0xf] %vm40, %v810
  %855 = vst.msk [vmem:[#allocation2 + $0x5c] sm:$0x7] %vm42, %v813
  %856 = vst.msk [vmem:[#allocation2 + $0x64] sm:$0xf] %vm40, %v817
  %857 = vst.msk [vmem:[#allocation2 + $0x6c] sm:$0x7] %vm42, %v820
  %858 = vst.msk [vmem:[#allocation2 + $0x74] sm:$0xf] %vm40, %v824
  %859 = vst.msk [vmem:[#allocation2 + $0x7c] sm:$0x7] %vm42, %v827
  %vm860 = vcmask 1043712
  %861 = vst.msk [vmem:[#allocation2 + $0x4] sm:$0xf] %vm860, 0
  %vm862 = vcmask 1042688
  %863 = vst.msk [vmem:[#allocation2 + $0xc] sm:$0x7] %vm862, 0
  %864 = vst.msk [vmem:[#allocation2 + $0x14] sm:$0xf] %vm860, 0
  %865 = vst.msk [vmem:[#allocation2 + $0x1c] sm:$0x7] %vm862, 0
  %866 = vst.msk [vmem:[#allocation2 + $0x24] sm:$0xf] %vm860, 0
  %867 = vst.msk [vmem:[#allocation2 + $0x2c] sm:$0x7] %vm862, 0
  %868 = vst.msk [vmem:[#allocation2 + $0x34] sm:$0xf] %vm860, 0
  %869 = vst.msk [vmem:[#allocation2 + $0x3c] sm:$0x7] %vm862, 0
  %870 = vst.msk [vmem:[#allocation2 + $0x44] sm:$0xf] %vm860, 0
  %871 = vst.msk [vmem:[#allocation2 + $0x4c] sm:$0x7] %vm862, 0
  %872 = vst.msk [vmem:[#allocation2 + $0x54] sm:$0xf] %vm860, 0
  %873 = vst.msk [vmem:[#allocation2 + $0x5c] sm:$0x7] %vm862, 0
  %874 = vst.msk [vmem:[#allocation2 + $0x64] sm:$0xf] %vm860, 0
  %875 = vst.msk [vmem:[#allocation2 + $0x6c] sm:$0x7] %vm862, 0
  %876 = vst.msk [vmem:[#allocation2 + $0x74] sm:$0xf] %vm860, 0
  %877 = vst.msk [vmem:[#allocation2 + $0x7c] sm:$0x7] %vm862, 0
  %v878 = vld [vmem:[#allocation2] sm:$0xff]
  %v879 = vld [vmem:[#allocation2 + $0x8] sm:$0x77]
  %v880 = vld [vmem:[#allocation2 + $0x10] sm:$0xff]
  %v881 = vld [vmem:[#allocation2 + $0x18] sm:$0x77]
  %v882 = vld [vmem:[#allocation2 + $0x20] sm:$0xff]
  %v883 = vld [vmem:[#allocation2 + $0x28] sm:$0x77]
  %v884 = vld [vmem:[#allocation2 + $0x30] sm:$0xff]
  %v885 = vld [vmem:[#allocation2 + $0x38] sm:$0x77]
  %v886 = vld [vmem:[#allocation2 + $0x40] sm:$0xff]
  %v887 = vld [vmem:[#allocation2 + $0x48] sm:$0x77]
  %v888 = vld [vmem:[#allocation2 + $0x50] sm:$0xff]
  %v889 = vld [vmem:[#allocation2 + $0x58] sm:$0x77]
  %v890 = vld [vmem:[#allocation2 + $0x60] sm:$0xff]
  %v891 = vld [vmem:[#allocation2 + $0x68] sm:$0x77]
  %v892 = vld [vmem:[#allocation2 + $0x70] sm:$0xff]
  %v893 = vld [vmem:[#allocation2 + $0x78] sm:$0x77]
  %v894 = vld [vmem:[%s1] sm:$0xf]
  %v895 = vld [vmem:[%s1 + $0x4] sm:$0xf]
  %v896 = vld [vmem:[%s1 + $0x8] sm:$0xf]
  %v897 = vld [vmem:[%s1 + $0xc] sm:$0xf]
  %v898 = vld [vmem:[%s1 + $0x10] sm:$0xf]
  %v899 = vld [vmem:[%s1 + $0x14] sm:$0xf]
  %v900 = vld [vmem:[%s1 + $0x18] sm:$0xf]
  %v901 = vld [vmem:[%s1 + $0x1c] sm:$0xf]
  %v902 = vld [vmem:[%s1 + $0x20] sm:$0xf]
  %v903 = vld [vmem:[%s1 + $0x24] sm:$0xf]
  %v904 = vld [vmem:[%s1 + $0x28] sm:$0xf]
  %v905 = vld [vmem:[%s1 + $0x2c] sm:$0xf]
  %v906 = vld [vmem:[%s1 + $0x30] sm:$0xf]
  %v907 = vld [vmem:[%s1 + $0x34] sm:$0xf]
  %v908 = vld [vmem:[%s1 + $0x38] sm:$0xf]
  %v909 = vld [vmem:[%s1 + $0x3c] sm:$0xf]
  %v910 = vld [vmem:[%s1 + $0x40] sm:$0xf]
  %v911 = vld [vmem:[%s1 + $0x44] sm:$0xf]
  %v912 = vld [vmem:[%s1 + $0x48] sm:$0xf]
  %v913 = vld [vmem:[%s1 + $0x4c] sm:$0xf]
  %v914 = vld [vmem:[%s1 + $0x50] sm:$0xf]
  %v915 = vld [vmem:[%s1 + $0x54] sm:$0xf]
  %v916 = vld [vmem:[%s1 + $0x58] sm:$0xf]
  %v917 = vld [vmem:[%s1 + $0x5c] sm:$0xf]
  %v918 = vld [vmem:[%s1 + $0x60] sm:$0xf]
  %v919 = vld [vmem:[%s1 + $0x64] sm:$0xf]
  %v920 = vld [vmem:[%s1 + $0x68] sm:$0xf]
  %v921 = vld [vmem:[%s1 + $0x6c] sm:$0xf]
  %v922 = vld [vmem:[%s1 + $0x70] sm:$0xf]
  %v923 = vld [vmem:[%s1 + $0x74] sm:$0xf]
  %v924 = vld [vmem:[%s1 + $0x78] sm:$0xf]
  %v925 = vld [vmem:[%s1 + $0x7c] sm:$0xf]
  %v926 = vld [vmem:[%s2] sm:$0x1]
  %v928 = vperm.slane %v926, 0
  %v945 = vrot.slane %v878, 3
  %v946 = vrot.slane %v879, 3
  %v947 = vrot.slane %v880, 3
  %v948 = vrot.slane %v881, 3
  %v949 = vrot.slane %v882, 3
  %v950 = vrot.slane %v883, 3
  %v951 = vrot.slane %v884, 3
  %v952 = vrot.slane %v885, 3
  %v953 = vrot.slane %v886, 3
  %v954 = vrot.slane %v887, 3
  %v955 = vrot.slane %v888, 3
  %v956 = vrot.slane %v889, 3
  %v957 = vrot.slane %v890, 3
  %v958 = vrot.slane %v891, 3
  %v959 = vrot.slane %v892, 3
  %v960 = vrot.slane %v893, 3
  %vm961 = vcmask 1040384
  %v964 = vsel %vm961, %v878, %v945
  %vm965 = vcmask 1041409
  %v966 = vsel %vm965, %v878, %v945
  %v968 = vrot.slane %v966, 1
  %vm969 = vcmask 1042434
  %v970 = vsel %vm969, %v878, %v945
  %v972 = vrot.slane %v970, 2
  %vm973 = vcmask 1043459
  %v974 = vsel %vm973, %v878, %v945
  %v976 = vrot.slane %v974, 3
  %v979 = vsel %vm961, %v879, %v946
  %v980 = vsel %vm965, %v879, %v946
  %v982 = vrot.slane %v980, 1
  %v983 = vsel %vm969, %v879, %v946
  %v985 = vrot.slane %v983, 2
  %v988 = vsel %vm961, %v880, %v947
  %v989 = vsel %vm965, %v880, %v947
  %v991 = vrot.slane %v989, 1
  %v992 = vsel %vm969, %v880, %v947
  %v994 = vrot.slane %v992, 2
  %v995 = vsel %vm973, %v880, %v947
  %v997 = vrot.slane %v995, 3
  %v1000 = vsel %vm961, %v881, %v948
  %v1001 = vsel %vm965, %v881, %v948
  %v1003 = vrot.slane %v1001, 1
  %v1004 = vsel %vm969, %v881, %v948
  %v1006 = vrot.slane %v1004, 2
  %v1009 = vsel %vm961, %v882, %v949
  %v1010 = vsel %vm965, %v882, %v949
  %v1012 = vrot.slane %v1010, 1
  %v1013 = vsel %vm969, %v882, %v949
  %v1015 = vrot.slane %v1013, 2
  %v1016 = vsel %vm973, %v882, %v949
  %v1018 = vrot.slane %v1016, 3
  %v1021 = vsel %vm961, %v883, %v950
  %v1022 = vsel %vm965, %v883, %v950
  %v1024 = vrot.slane %v1022, 1
  %v1025 = vsel %vm969, %v883, %v950
  %v1027 = vrot.slane %v1025, 2
  %v1030 = vsel %vm961, %v884, %v951
  %v1031 = vsel %vm965, %v884, %v951
  %v1033 = vrot.slane %v1031, 1
  %v1034 = vsel %vm969, %v884, %v951
  %v1036 = vrot.slane %v1034, 2
  %v1037 = vsel %vm973, %v884, %v951
  %v1039 = vrot.slane %v1037, 3
  %v1042 = vsel %vm961, %v885, %v952
  %v1043 = vsel %vm965, %v885, %v952
  %v1045 = vrot.slane %v1043, 1
  %v1046 = vsel %vm969, %v885, %v952
  %v1048 = vrot.slane %v1046, 2
  %v1051 = vsel %vm961, %v886, %v953
  %v1052 = vsel %vm965, %v886, %v953
  %v1054 = vrot.slane %v1052, 1
  %v1055 = vsel %vm969, %v886, %v953
  %v1057 = vrot.slane %v1055, 2
  %v1058 = vsel %vm973, %v886, %v953
  %v1060 = vrot.slane %v1058, 3
  %v1063 = vsel %vm961, %v887, %v954
  %v1064 = vsel %vm965, %v887, %v954
  %v1066 = vrot.slane %v1064, 1
  %v1067 = vsel %vm969, %v887, %v954
  %v1069 = vrot.slane %v1067, 2
  %v1072 = vsel %vm961, %v888, %v955
  %v1073 = vsel %vm965, %v888, %v955
  %v1075 = vrot.slane %v1073, 1
  %v1076 = vsel %vm969, %v888, %v955
  %v1078 = vrot.slane %v1076, 2
  %v1079 = vsel %vm973, %v888, %v955
  %v1081 = vrot.slane %v1079, 3
  %v1084 = vsel %vm961, %v889, %v956
  %v1085 = vsel %vm965, %v889, %v956
  %v1087 = vrot.slane %v1085, 1
  %v1088 = vsel %vm969, %v889, %v956
  %v1090 = vrot.slane %v1088, 2
  %v1093 = vsel %vm961, %v890, %v957
  %v1094 = vsel %vm965, %v890, %v957
  %v1096 = vrot.slane %v1094, 1
  %v1097 = vsel %vm969, %v890, %v957
  %v1099 = vrot.slane %v1097, 2
  %v1100 = vsel %vm973, %v890, %v957
  %v1102 = vrot.slane %v1100, 3
  %v1105 = vsel %vm961, %v891, %v958
  %v1106 = vsel %vm965, %v891, %v958
  %v1108 = vrot.slane %v1106, 1
  %v1109 = vsel %vm969, %v891, %v958
  %v1111 = vrot.slane %v1109, 2
  %v1114 = vsel %vm961, %v892, %v959
  %v1115 = vsel %vm965, %v892, %v959
  %v1117 = vrot.slane %v1115, 1
  %v1118 = vsel %vm969, %v892, %v959
  %v1120 = vrot.slane %v1118, 2
  %v1121 = vsel %vm973, %v892, %v959
  %v1123 = vrot.slane %v1121, 3
  %v1126 = vsel %vm961, %v893, %v960
  %v1127 = vsel %vm965, %v893, %v960
  %v1129 = vrot.slane %v1127, 1
  %v1130 = vsel %vm969, %v893, %v960
  %v1132 = vrot.slane %v1130, 2
  %v1133 = vrot.slane %v928, 2
  %v1134 = vrot.slane %v928, 4
  %v1135 = vrot.slane %v928, 6
  %1136 = vst [vmem:[#allocation1] ss:$9 sm:$0xff] %v964
  %s1138 = scalar_lea.vmem [#allocation1], 1
  %1139 = vst [vmem:[%s1138] ss:$9 sm:$0xff] %v968
  %s1141 = scalar_lea.vmem [#allocation1], 2
  %1142 = vst [vmem:[%s1141] ss:$9 sm:$0xff] %v972
  %s1144 = scalar_lea.vmem [#allocation1], 3
  %1145 = vst [vmem:[%s1144] ss:$9 sm:$0xff] %v976
  %s1146 = scalar_lea.vmem [#allocation1], 4
  %1147 = vst [vmem:[%s1146] ss:$9 sm:$0xff] %v979
  %s1149 = scalar_lea.vmem [#allocation1], 5
  %1150 = vst [vmem:[%s1149] ss:$9 sm:$0xff] %v982
  %s1152 = scalar_lea.vmem [#allocation1], 6
  %1153 = vst [vmem:[%s1152] ss:$9 sm:$0xff] %v985
  %s1154 = scalar_lea.vmem [#allocation1], 7
  %1155 = vst [vmem:[%s1154] ss:$9 sm:$0xff] %v988
  %v1156 = vld [vmem:[#allocation1] sm:$0xff]
  %v1157 = vld [vmem:[#allocation1 + $0x9] sm:$0xff]
  %1159 = vst [vmem:[#allocation1] ss:$9 sm:$0xff] %v991
  %1161 = vst [vmem:[%s1138] ss:$9 sm:$0xff] %v994
  %1163 = vst [vmem:[%s1141] ss:$9 sm:$0xff] %v997
  %1164 = vst [vmem:[%s1144] ss:$9 sm:$0xff] %v1000
  %1166 = vst [vmem:[%s1146] ss:$9 sm:$0xff] %v1003
  %1168 = vst [vmem:[%s1149] ss:$9 sm:$0xff] %v1006
  %1169 = vst [vmem:[%s1152] ss:$9 sm:$0xff] %v1009
  %1171 = vst [vmem:[%s1154] ss:$9 sm:$0xff] %v1012
  %v1172 = vld [vmem:[#allocation1] sm:$0xff]
  %v1173 = vld [vmem:[#allocation1 + $0x9] sm:$0xff]
  %1175 = vst [vmem:[#allocation1] ss:$9 sm:$0xff] %v1015
  %1177 = vst [vmem:[%s1138] ss:$9 sm:$0xff] %v1018
  %1178 = vst [vmem:[%s1141] ss:$9 sm:$0xff] %v1021
  %1180 = vst [vmem:[%s1144] ss:$9 sm:$0xff] %v1024
  %1182 = vst [vmem:[%s1146] ss:$9 sm:$0xff] %v1027
  %1183 = vst [vmem:[%s1149] ss:$9 sm:$0xff] %v1030
  %1185 = vst [vmem:[%s1152] ss:$9 sm:$0xff] %v1033
  %1187 = vst [vmem:[%s1154] ss:$9 sm:$0xff] %v1036
  %v1188 = vld [vmem:[#allocation1] sm:$0xff]
  %v1189 = vld [vmem:[#allocation1 + $0x9] sm:$0xff]
  %1191 = vst [vmem:[#allocation1] ss:$9 sm:$0xff] %v1039
  %1192 = vst [vmem:[%s1138] ss:$9 sm:$0xff] %v1042
  %1194 = vst [vmem:[%s1141] ss:$9 sm:$0xff] %v1045
  %1196 = vst [vmem:[%s1144] ss:$9 sm:$0xff] %v1048
  %1197 = vst [vmem:[%s1146] ss:$9 sm:$0xff] %v1051
  %1199 = vst [vmem:[%s1149] ss:$9 sm:$0xff] %v1054
  %1201 = vst [vmem:[%s1152] ss:$9 sm:$0xff] %v1057
  %1203 = vst [vmem:[%s1154] ss:$9 sm:$0xff] %v1060
  %v1204 = vld [vmem:[#allocation1] sm:$0xff]
  %v1205 = vld [vmem:[#allocation1 + $0x9] sm:$0xff]
  %1206 = vst [vmem:[#allocation1] ss:$9 sm:$0xff] %v1063
  %1208 = vst [vmem:[%s1138] ss:$9 sm:$0xff] %v1066
  %1210 = vst [vmem:[%s1141] ss:$9 sm:$0xff] %v1069
  %1211 = vst [vmem:[%s1144] ss:$9 sm:$0xff] %v1072
  %1213 = vst [vmem:[%s1146] ss:$9 sm:$0xff] %v1075
  %1215 = vst [vmem:[%s1149] ss:$9 sm:$0xff] %v1078
  %1217 = vst [vmem:[%s1152] ss:$9 sm:$0xff] %v1081
  %1218 = vst [vmem:[%s1154] ss:$9 sm:$0xff] %v1084
  %v1219 = vld [vmem:[#allocation1] sm:$0xff]
  %v1220 = vld [vmem:[#allocation1 + $0x9] sm:$0xff]
  %1222 = vst [vmem:[#allocation1] ss:$9 sm:$0xff] %v1087
  %1224 = vst [vmem:[%s1138] ss:$9 sm:$0xff] %v1090
  %1225 = vst [vmem:[%s1141] ss:$9 sm:$0xff] %v1093
  %1227 = vst [vmem:[%s1144] ss:$9 sm:$0xff] %v1096
  %1229 = vst [vmem:[%s1146] ss:$9 sm:$0xff] %v1099
  %1231 = vst [vmem:[%s1149] ss:$9 sm:$0xff] %v1102
  %1232 = vst [vmem:[%s1152] ss:$9 sm:$0xff] %v1105
  %1234 = vst [vmem:[%s1154] ss:$9 sm:$0xff] %v1108
  %v1235 = vld [vmem:[#allocation1] sm:$0xff]
  %v1236 = vld [vmem:[#allocation1 + $0x9] sm:$0xff]
  %1238 = vst [vmem:[#allocation1] ss:$9 sm:$0xff] %v1111
  %1239 = vst [vmem:[%s1138] ss:$9 sm:$0xff] %v1114
  %1241 = vst [vmem:[%s1141] ss:$9 sm:$0xff] %v1117
  %1243 = vst [vmem:[%s1144] ss:$9 sm:$0xff] %v1120
  %1245 = vst [vmem:[%s1146] ss:$9 sm:$0xff] %v1123
  %1246 = vst [vmem:[%s1149] ss:$9 sm:$0xff] %v1126
  %1248 = vst [vmem:[%s1152] ss:$9 sm:$0xff] %v1129
  %1250 = vst [vmem:[%s1154] ss:$9 sm:$0xff] %v1132
  %v1251 = vld [vmem:[#allocation1] sm:$0xff]
  %v1252 = vld [vmem:[#allocation1 + $0x9] sm:$0xff]
  %v1299 = vunpack.c.l.b16 %v894
  %v1300 = vunpack.c.l.b16 %v895
  %v1301 = vunpack.c.l.b16 %v896
  %v1302 = vunpack.c.l.b16 %v897
  %v1303 = vunpack.c.l.b16 %v898
  %v1304 = vunpack.c.l.b16 %v899
  %v1305 = vunpack.c.l.b16 %v900
  %v1306 = vunpack.c.l.b16 %v901
  %v1307 = vunpack.c.l.b16 %v902
  %v1308 = vunpack.c.l.b16 %v903
  %v1309 = vunpack.c.l.b16 %v904
  %v1310 = vunpack.c.l.b16 %v905
  %v1311 = vunpack.c.l.b16 %v906
  %v1312 = vunpack.c.l.b16 %v907
  %v1313 = vunpack.c.l.b16 %v908
  %v1314 = vunpack.c.l.b16 %v909
  %v1315 = vunpack.c.l.b16 %v910
  %v1316 = vunpack.c.l.b16 %v911
  %v1317 = vunpack.c.l.b16 %v912
  %v1318 = vunpack.c.l.b16 %v913
  %v1319 = vunpack.c.l.b16 %v914
  %v1320 = vunpack.c.l.b16 %v915
  %v1321 = vunpack.c.l.b16 %v916
  %v1322 = vunpack.c.l.b16 %v917
  %v1323 = vunpack.c.l.b16 %v918
  %v1324 = vunpack.c.l.b16 %v919
  %v1325 = vunpack.c.l.b16 %v920
  %v1326 = vunpack.c.l.b16 %v921
  %v1327 = vunpack.c.l.b16 %v922
  %v1328 = vunpack.c.l.b16 %v923
  %v1329 = vunpack.c.l.b16 %v924
  %v1330 = vunpack.c.l.b16 %v925
  %v1331 = vpack.c.b16 %v1300, %v1299
  %v1332 = vpack.c.b16 %v1302, %v1301
  %v1333 = vpack.c.b16 %v1304, %v1303
  %v1334 = vpack.c.b16 %v1306, %v1305
  %v1335 = vpack.c.b16 %v1308, %v1307
  %v1336 = vpack.c.b16 %v1310, %v1309
  %v1337 = vpack.c.b16 %v1312, %v1311
  %v1338 = vpack.c.b16 %v1314, %v1313
  %v1339 = vpack.c.b16 %v1316, %v1315
  %v1340 = vpack.c.b16 %v1318, %v1317
  %v1341 = vpack.c.b16 %v1320, %v1319
  %v1342 = vpack.c.b16 %v1322, %v1321
  %v1343 = vpack.c.b16 %v1324, %v1323
  %v1344 = vpack.c.b16 %v1326, %v1325
  %v1345 = vpack.c.b16 %v1328, %v1327
  %v1346 = vpack.c.b16 %v1330, %v1329
  %1363 = vst [vmem:[#allocation1] ss:$4 sm:$0xff] %v928
  %s1364 = scalar_lea.vmem [#allocation1], 1
  %1365 = vst [vmem:[%s1364] ss:$4 sm:$0xff] %v1133
  %s1366 = scalar_lea.vmem [#allocation1], 2
  %1367 = vst [vmem:[%s1366] ss:$4 sm:$0xff] %v1134
  %s1368 = scalar_lea.vmem [#allocation1], 3
  %1369 = vst [vmem:[%s1368] ss:$4 sm:$0xff] %v1135
  %s1370 = scalar_lea.vmem [#allocation1], 32
  %1371 = vst [vmem:[%s1370] ss:$4 sm:$0xff] %v928
  %s1372 = scalar_lea.vmem [#allocation1], 33
  %1373 = vst [vmem:[%s1372] ss:$4 sm:$0xff] %v1133
  %s1374 = scalar_lea.vmem [#allocation1], 34
  %1375 = vst [vmem:[%s1374] ss:$4 sm:$0xff] %v1134
  %s1376 = scalar_lea.vmem [#allocation1], 35
  %1377 = vst [vmem:[%s1376] ss:$4 sm:$0xff] %v928
  %v1378 = vld.sshfl [vmem:[#allocation1] sm:$0xff pattern:$0x73625140]
  %v1379 = vld.sshfl [vmem:[#allocation1 + $0x20] sm:$0xff pattern:$0x73625140]
  %1380 = vst [vmem:[#allocation1] ss:$4 sm:$0xff] %v1133
  %1381 = vst [vmem:[%s1364] ss:$4 sm:$0xff] %v1134
  %1382 = vst [vmem:[%s1366] ss:$4 sm:$0xff] %v1135
  %1383 = vst [vmem:[%s1368] ss:$4 sm:$0xff] %v928
  %1384 = vst [vmem:[%s1370] ss:$4 sm:$0xff] %v1133
  %1385 = vst [vmem:[%s1372] ss:$4 sm:$0xff] %v1134
  %1386 = vst [vmem:[%s1374] ss:$4 sm:$0xff] %v928
  %1387 = vst [vmem:[%s1376] ss:$4 sm:$0xff] %v1133
  %v1388 = vld.sshfl [vmem:[#allocation1] sm:$0xff pattern:$0x73625140]
  %v1389 = vld.sshfl [vmem:[#allocation1 + $0x20] sm:$0xff pattern:$0x73625140]
  %1390 = vst [vmem:[#allocation1] ss:$4 sm:$0xff] %v1134
  %1391 = vst [vmem:[%s1364] ss:$4 sm:$0xff] %v1135
  %1392 = vst [vmem:[%s1366] ss:$4 sm:$0xff] %v928
  %1393 = vst [vmem:[%s1368] ss:$4 sm:$0xff] %v1133
  %1394 = vst [vmem:[%s1370] ss:$4 sm:$0xff] %v1134
  %1395 = vst [vmem:[%s1372] ss:$4 sm:$0xff] %v928
  %1396 = vst [vmem:[%s1374] ss:$4 sm:$0xff] %v1133
  %1397 = vst [vmem:[%s1376] ss:$4 sm:$0xff] %v1134
  %v1398 = vld.sshfl [vmem:[#allocation1] sm:$0xff pattern:$0x73625140]
  %v1399 = vld.sshfl [vmem:[#allocation1 + $0x20] sm:$0xff pattern:$0x73625140]
  %1400 = vst [vmem:[#allocation1] ss:$4 sm:$0xff] %v1135
  %1401 = vst [vmem:[%s1364] ss:$4 sm:$0xff] %v928
  %1402 = vst [vmem:[%s1366] ss:$4 sm:$0xff] %v1133
  %1403 = vst [vmem:[%s1368] ss:$4 sm:$0xff] %v1134
  %1404 = vst [vmem:[%s1370] ss:$4 sm:$0xff] %v928
  %1405 = vst [vmem:[%s1372] ss:$4 sm:$0xff] %v1133
  %1406 = vst [vmem:[%s1374] ss:$4 sm:$0xff] %v1134
  %1407 = vst [vmem:[%s1376] ss:$4 sm:$0xff] %v1135
  %v1408 = vld.sshfl [vmem:[#allocation1] sm:$0xff pattern:$0x73625140]
  %v1409 = vld.sshfl [vmem:[#allocation1 + $0x20] sm:$0xff pattern:$0x73625140]
  %1410 = vst [vmem:[#allocation1] ss:$4 sm:$0xff] %v928
  %1411 = vst [vmem:[%s1364] ss:$4 sm:$0xff] %v1133
  %1412 = vst [vmem:[%s1366] ss:$4 sm:$0xff] %v1134
  %1413 = vst [vmem:[%s1368] ss:$4 sm:$0xff] %v928
  %1414 = vst [vmem:[%s1370] ss:$4 sm:$0xff] %v1133
  %1415 = vst [vmem:[%s1372] ss:$4 sm:$0xff] %v1134
  %1416 = vst [vmem:[%s1374] ss:$4 sm:$0xff] %v1135
  %1417 = vst [vmem:[%s1376] ss:$4 sm:$0xff] %v928
  %v1418 = vld.sshfl [vmem:[#allocation1] sm:$0xff pattern:$0x73625140]
  %v1419 = vld.sshfl [vmem:[#allocation1 + $0x20] sm:$0xff pattern:$0x73625140]
  %1420 = vst [vmem:[#allocation1] ss:$4 sm:$0xff] %v1133
  %1421 = vst [vmem:[%s1364] ss:$4 sm:$0xff] %v1134
  %1422 = vst [vmem:[%s1366] ss:$4 sm:$0xff] %v928
  %1423 = vst [vmem:[%s1368] ss:$4 sm:$0xff] %v1133
  %1424 = vst [vmem:[%s1370] ss:$4 sm:$0xff] %v1134
  %1425 = vst [vmem:[%s1372] ss:$4 sm:$0xff] %v1135
  %1426 = vst [vmem:[%s1374] ss:$4 sm:$0xff] %v928
  %1427 = vst [vmem:[%s1376] ss:$4 sm:$0xff] %v1133
  %v1428 = vld.sshfl [vmem:[#allocation1] sm:$0xff pattern:$0x73625140]
  %v1429 = vld.sshfl [vmem:[#allocation1 + $0x20] sm:$0xff pattern:$0x73625140]
  %1430 = vst [vmem:[#allocation1] ss:$4 sm:$0xff] %v1134
  %1431 = vst [vmem:[%s1364] ss:$4 sm:$0xff] %v928
  %1432 = vst [vmem:[%s1366] ss:$4 sm:$0xff] %v1133
  %1433 = vst [vmem:[%s1368] ss:$4 sm:$0xff] %v1134
  %1434 = vst [vmem:[%s1370] ss:$4 sm:$0xff] %v1135
  %1435 = vst [vmem:[%s1372] ss:$4 sm:$0xff] %v928
  %1436 = vst [vmem:[%s1374] ss:$4 sm:$0xff] %v1133
  %1437 = vst [vmem:[%s1376] ss:$4 sm:$0xff] %v1134
  %v1438 = vld.sshfl [vmem:[#allocation1] sm:$0xff pattern:$0x73625140]
  %v1439 = vld.sshfl [vmem:[#allocation1 + $0x20] sm:$0xff pattern:$0x73625140]
  %1454 = vmatpush.bf16.msra.mxu0 %v1338
  %1455 = vmatpush.bf16.msra.mxu0 %v1337
  %1456 = vmatpush.bf16.msra.mxu0 %v1336
  %1457 = vmatpush.bf16.msra.mxu0 %v1335
  %1458 = vmatpush.bf16.msra.mxu0 %v1334
  %1459 = vmatpush.bf16.msra.mxu0 %v1333
  %1460 = vmatpush.bf16.msra.mxu0 %v1332
  %1461 = vmatpush.bf16.msra.mxu0 %v1331
  %1462 = vmatmul.bf16.gmra.mxu0 %v1156
  %v1463 = vpop.f32.mrf.mxu0
  %v1464 = vadd.f32 %v1378, %v1463
  %v1465 = vpop.f32.mrf.mxu0
  %v1466 = vadd.f32 %v1379, %v1465
  %1467 = vmatmul.bf16.gmra.mxu0 %v1172
  %v1468 = vpop.f32.mrf.mxu0
  %v1469 = vadd.f32 %v1388, %v1468
  %v1470 = vpop.f32.mrf.mxu0
  %v1471 = vadd.f32 %v1389, %v1470
  %1472 = vmatmul.bf16.gmra.mxu0 %v1188
  %v1473 = vpop.f32.mrf.mxu0
  %v1474 = vadd.f32 %v1398, %v1473
  %v1475 = vpop.f32.mrf.mxu0
  %v1476 = vadd.f32 %v1399, %v1475
  %1477 = vmatmul.bf16.gmra.mxu0 %v1204
  %v1478 = vpop.f32.mrf.mxu0
  %v1479 = vadd.f32 %v1408, %v1478
  %v1480 = vpop.f32.mrf.mxu0
  %v1481 = vadd.f32 %v1409, %v1480
  %1482 = vmatmul.bf16.gmra.mxu0 %v1219
  %v1483 = vpop.f32.mrf.mxu0
  %v1484 = vadd.f32 %v1418, %v1483
  %v1485 = vpop.f32.mrf.mxu0
  %v1486 = vadd.f32 %v1419, %v1485
  %1487 = vmatmul.bf16.gmra.mxu0 %v1235
  %v1488 = vpop.f32.mrf.mxu0
  %v1489 = vadd.f32 %v1428, %v1488
  %v1490 = vpop.f32.mrf.mxu0
  %v1491 = vadd.f32 %v1429, %v1490
  %1492 = vmatmul.bf16.gmra.mxu0 %v1251
  %v1493 = vpop.f32.mrf.mxu0
  %v1494 = vadd.f32 %v1438, %v1493
  %v1495 = vpop.f32.mrf.mxu0
  %v1496 = vadd.f32 %v1439, %v1495
  %1497 = vdwg.mxu0
  %1498 = vmatpush.bf16.msra.mxu0 %v1346
  %1499 = vmatpush.bf16.msra.mxu0 %v1345
  %1500 = vmatpush.bf16.msra.mxu0 %v1344
  %1501 = vmatpush.bf16.msra.mxu0 %v1343
  %1502 = vmatpush.bf16.msra.mxu0 %v1342
  %1503 = vmatpush.bf16.msra.mxu0 %v1341
  %1504 = vmatpush.bf16.msra.mxu0 %v1340
  %1505 = vmatpush.bf16.msra.mxu0 %v1339
  %1506 = vmatmul.bf16.gmra.mxu0 %v1157
  %v1507 = vpop.f32.mrf.mxu0
  %v1508 = vadd.f32 %v1464, %v1507
  %v1509 = vpop.f32.mrf.mxu0
  %v1510 = vadd.f32 %v1466, %v1509
  %1511 = vmatmul.bf16.gmra.mxu0 %v1173
  %v1512 = vpop.f32.mrf.mxu0
  %v1513 = vadd.f32 %v1469, %v1512
  %v1514 = vpop.f32.mrf.mxu0
  %v1515 = vadd.f32 %v1471, %v1514
  %1516 = vmatmul.bf16.gmra.mxu0 %v1189
  %v1517 = vpop.f32.mrf.mxu0
  %v1518 = vadd.f32 %v1474, %v1517
  %v1519 = vpop.f32.mrf.mxu0
  %v1520 = vadd.f32 %v1476, %v1519
  %1521 = vmatmul.bf16.gmra.mxu0 %v1205
  %v1522 = vpop.f32.mrf.mxu0
  %v1523 = vadd.f32 %v1479, %v1522
  %v1524 = vpop.f32.mrf.mxu0
  %v1525 = vadd.f32 %v1481, %v1524
  %1526 = vmatmul.bf16.gmra.mxu0 %v1220
  %v1527 = vpop.f32.mrf.mxu0
  %v1528 = vadd.f32 %v1484, %v1527
  %v1529 = vpop.f32.mrf.mxu0
  %v1530 = vadd.f32 %v1486, %v1529
  %1531 = vmatmul.bf16.gmra.mxu0 %v1236
  %v1532 = vpop.f32.mrf.mxu0
  %v1533 = vadd.f32 %v1489, %v1532
  %v1534 = vpop.f32.mrf.mxu0
  %v1535 = vadd.f32 %v1491, %v1534
  %1536 = vmatmul.bf16.gmra.mxu0 %v1252
  %v1537 = vpop.f32.mrf.mxu0
  %v1538 = vadd.f32 %v1494, %v1537
  %v1539 = vpop.f32.mrf.mxu0
  %v1540 = vadd.f32 %v1496, %v1539
  %1541 = vdwg.mxu0
  %v1556 = vrot.slane %v1508, 2
  %v1557 = vrot.slane %v1508, 4
  %v1558 = vrot.slane %v1508, 6
  %v1559 = vrot.slane %v1510, 2
  %v1560 = vrot.slane %v1510, 4
  %v1561 = vrot.slane %v1510, 6
  %v1562 = vrot.slane %v1513, 2
  %v1563 = vrot.slane %v1513, 4
  %v1564 = vrot.slane %v1513, 6
  %v1565 = vrot.slane %v1515, 2
  %v1566 = vrot.slane %v1515, 4
  %v1567 = vrot.slane %v1515, 6
  %v1568 = vrot.slane %v1518, 2
  %v1569 = vrot.slane %v1518, 4
  %v1570 = vrot.slane %v1518, 6
  %v1571 = vrot.slane %v1520, 2
  %v1572 = vrot.slane %v1520, 4
  %v1573 = vrot.slane %v1520, 6
  %v1574 = vrot.slane %v1523, 2
  %v1575 = vrot.slane %v1523, 4
  %v1576 = vrot.slane %v1523, 6
  %v1577 = vrot.slane %v1525, 2
  %v1578 = vrot.slane %v1525, 4
  %v1579 = vrot.slane %v1525, 6
  %v1580 = vrot.slane %v1528, 2
  %v1581 = vrot.slane %v1528, 4
  %v1582 = vrot.slane %v1528, 6
  %v1583 = vrot.slane %v1530, 2
  %v1584 = vrot.slane %v1530, 4
  %v1585 = vrot.slane %v1530, 6
  %v1586 = vrot.slane %v1533, 2
  %v1587 = vrot.slane %v1533, 4
  %v1588 = vrot.slane %v1533, 6
  %v1589 = vrot.slane %v1535, 2
  %v1590 = vrot.slane %v1535, 4
  %v1591 = vrot.slane %v1535, 6
  %v1592 = vrot.slane %v1538, 2
  %v1593 = vrot.slane %v1538, 4
  %v1594 = vrot.slane %v1538, 6
  %v1595 = vrot.slane %v1540, 2
  %v1596 = vrot.slane %v1540, 4
  %v1597 = vrot.slane %v1540, 6
  %v1640 = vmax.f32 %v1508, 0.0
  %v1641 = vmax.f32 %v1556, 0.0
  %v1642 = vmax.f32 %v1557, 0.0
  %v1643 = vmax.f32 %v1558, 0.0
  %v1644 = vmax.f32 %v1510, 0.0
  %v1645 = vmax.f32 %v1559, 0.0
  %v1646 = vmax.f32 %v1560, 0.0
  %v1647 = vmax.f32 %v1561, 0.0
  %v1648 = vmax.f32 %v1513, 0.0
  %v1649 = vmax.f32 %v1562, 0.0
  %v1650 = vmax.f32 %v1563, 0.0
  %v1651 = vmax.f32 %v1564, 0.0
  %v1652 = vmax.f32 %v1515, 0.0
  %v1653 = vmax.f32 %v1565, 0.0
  %v1654 = vmax.f32 %v1566, 0.0
  %v1655 = vmax.f32 %v1567, 0.0
  %v1656 = vmax.f32 %v1518, 0.0
  %v1657 = vmax.f32 %v1568, 0.0
  %v1658 = vmax.f32 %v1569, 0.0
  %v1659 = vmax.f32 %v1570, 0.0
  %v1660 = vmax.f32 %v1520, 0.0
  %v1661 = vmax.f32 %v1571, 0.0
  %v1662 = vmax.f32 %v1572, 0.0
  %v1663 = vmax.f32 %v1573, 0.0
  %v1664 = vmax.f32 %v1523, 0.0
  %v1665 = vmax.f32 %v1574, 0.0
  %v1666 = vmax.f32 %v1575, 0.0
  %v1667 = vmax.f32 %v1576, 0.0
  %v1668 = vmax.f32 %v1525, 0.0
  %v1669 = vmax.f32 %v1577, 0.0
  %v1670 = vmax.f32 %v1578, 0.0
  %v1671 = vmax.f32 %v1579, 0.0
  %v1672 = vmax.f32 %v1528, 0.0
  %v1673 = vmax.f32 %v1580, 0.0
  %v1674 = vmax.f32 %v1581, 0.0
  %v1675 = vmax.f32 %v1582, 0.0
  %v1676 = vmax.f32 %v1530, 0.0
  %v1677 = vmax.f32 %v1583, 0.0
  %v1678 = vmax.f32 %v1584, 0.0
  %v1679 = vmax.f32 %v1585, 0.0
  %v1680 = vmax.f32 %v1533, 0.0
  %v1681 = vmax.f32 %v1586, 0.0
  %v1682 = vmax.f32 %v1587, 0.0
  %v1683 = vmax.f32 %v1588, 0.0
  %v1684 = vmax.f32 %v1535, 0.0
  %v1685 = vmax.f32 %v1589, 0.0
  %v1686 = vmax.f32 %v1590, 0.0
  %v1687 = vmax.f32 %v1591, 0.0
  %v1688 = vmax.f32 %v1538, 0.0
  %v1689 = vmax.f32 %v1592, 0.0
  %v1690 = vmax.f32 %v1593, 0.0
  %v1691 = vmax.f32 %v1594, 0.0
  %v1692 = vmax.f32 %v1540, 0.0
  %v1693 = vmax.f32 %v1595, 0.0
  %v1694 = vmax.f32 %v1596, 0.0
  %v1695 = vmax.f32 %v1597, 0.0
  %v1696 = vld [vmem:[%s3] sm:$0xff]
  %v1697 = vld [vmem:[%s3 + $0x8] sm:$0x3f]
  %v1700 = vrot.slane %v1696, 2
  %v1701 = vrot.slane %v1696, 4
  %v1702 = vrot.slane %v1696, 6
  %v1703 = vrot.slane %v1697, 2
  %v1704 = vrot.slane %v1697, 4
  %v1710 = vmul.f32 %v1640, %v1696
  %v1711 = vmul.f32 %v1641, %v1700
  %v1712 = vmul.f32 %v1642, %v1701
  %v1713 = vmul.f32 %v1643, %v1702
  %v1714 = vmul.f32 %v1644, %v1697
  %v1715 = vmul.f32 %v1645, %v1703
  %v1716 = vmul.f32 %v1646, %v1704
  %v1717 = vmul.f32 %v1647, %v1696
  %v1718 = vmul.f32 %v1648, %v1700
  %v1719 = vmul.f32 %v1649, %v1701
  %v1720 = vmul.f32 %v1650, %v1702
  %v1721 = vmul.f32 %v1651, %v1697
  %v1722 = vmul.f32 %v1652, %v1703
  %v1723 = vmul.f32 %v1653, %v1704
  %v1724 = vmul.f32 %v1654, %v1696
  %v1725 = vmul.f32 %v1655, %v1700
  %v1726 = vmul.f32 %v1656, %v1701
  %v1727 = vmul.f32 %v1657, %v1702
  %v1728 = vmul.f32 %v1658, %v1697
  %v1729 = vmul.f32 %v1659, %v1703
  %v1730 = vmul.f32 %v1660, %v1704
  %v1731 = vmul.f32 %v1661, %v1696
  %v1732 = vmul.f32 %v1662, %v1700
  %v1733 = vmul.f32 %v1663, %v1701
  %v1734 = vmul.f32 %v1664, %v1702
  %v1735 = vmul.f32 %v1665, %v1697
  %v1736 = vmul.f32 %v1666, %v1703
  %v1737 = vmul.f32 %v1667, %v1704
  %v1738 = vmul.f32 %v1668, %v1696
  %v1739 = vmul.f32 %v1669, %v1700
  %v1740 = vmul.f32 %v1670, %v1701
  %v1741 = vmul.f32 %v1671, %v1702
  %v1742 = vmul.f32 %v1672, %v1697
  %v1743 = vmul.f32 %v1673, %v1703
  %v1744 = vmul.f32 %v1674, %v1704
  %v1745 = vmul.f32 %v1675, %v1696
  %v1746 = vmul.f32 %v1676, %v1700
  %v1747 = vmul.f32 %v1677, %v1701
  %v1748 = vmul.f32 %v1678, %v1702
  %v1749 = vmul.f32 %v1679, %v1697
  %v1750 = vmul.f32 %v1680, %v1703
  %v1751 = vmul.f32 %v1681, %v1704
  %v1752 = vmul.f32 %v1682, %v1696
  %v1753 = vmul.f32 %v1683, %v1700
  %v1754 = vmul.f32 %v1684, %v1701
  %v1755 = vmul.f32 %v1685, %v1702
  %v1756 = vmul.f32 %v1686, %v1697
  %v1757 = vmul.f32 %v1687, %v1703
  %v1758 = vmul.f32 %v1688, %v1704
  %v1759 = vmul.f32 %v1689, %v1696
  %v1760 = vmul.f32 %v1690, %v1700
  %v1761 = vmul.f32 %v1691, %v1701
  %v1762 = vmul.f32 %v1692, %v1702
  %v1763 = vmul.f32 %v1693, %v1697
  %v1764 = vmul.f32 %v1694, %v1703
  %v1765 = vmul.f32 %v1695, %v1704
  %1822 = vst [vmem:[#allocation1] ss:$4 sm:$0xff] %v1710
  %s1823 = scalar_lea.vmem [#allocation1], 1
  %1824 = vst [vmem:[%s1823] ss:$4 sm:$0xff] %v1711
  %s1825 = scalar_lea.vmem [#allocation1], 2
  %1826 = vst [vmem:[%s1825] ss:$4 sm:$0xff] %v1712
  %s1827 = scalar_lea.vmem [#allocation1], 3
  %1828 = vst [vmem:[%s1827] ss:$4 sm:$0xff] %v1713
  %s1829 = scalar_lea.vmem [#allocation1], 32
  %1830 = vst [vmem:[%s1829] ss:$4 sm:$0xff] %v1714
  %s1831 = scalar_lea.vmem [#allocation1], 33
  %1832 = vst [vmem:[%s1831] ss:$4 sm:$0xff] %v1715
  %s1833 = scalar_lea.vmem [#allocation1], 34
  %1834 = vst [vmem:[%s1833] ss:$4 sm:$0xff] %v1716
  %v1835 = vld.sshfl [vmem:[#allocation1] sm:$0xff pattern:$0x73625140]
  %v1836 = vld.sshfl [vmem:[#allocation1 + $0x20] sm:$0xff pattern:$0x73625140]
  %1837 = vst [vmem:[#allocation1] ss:$4 sm:$0xff] %v1717
  %1838 = vst [vmem:[%s1823] ss:$4 sm:$0xff] %v1718
  %1839 = vst [vmem:[%s1825] ss:$4 sm:$0xff] %v1719
  %1840 = vst [vmem:[%s1827] ss:$4 sm:$0xff] %v1720
  %1841 = vst [vmem:[%s1829] ss:$4 sm:$0xff] %v1721
  %1842 = vst [vmem:[%s1831] ss:$4 sm:$0xff] %v1722
  %1843 = vst [vmem:[%s1833] ss:$4 sm:$0xff] %v1723
  %v1844 = vld.sshfl [vmem:[#allocation1] sm:$0xff pattern:$0x73625140]
  %v1845 = vld.sshfl [vmem:[#allocation1 + $0x20] sm:$0xff pattern:$0x73625140]
  %1846 = vst [vmem:[#allocation1] ss:$4 sm:$0xff] %v1724
  %1847 = vst [vmem:[%s1823] ss:$4 sm:$0xff] %v1725
  %1848 = vst [vmem:[%s1825] ss:$4 sm:$0xff] %v1726
  %1849 = vst [vmem:[%s1827] ss:$4 sm:$0xff] %v1727
  %1850 = vst [vmem:[%s1829] ss:$4 sm:$0xff] %v1728
  %1851 = vst [vmem:[%s1831] ss:$4 sm:$0xff] %v1729
  %1852 = vst [vmem:[%s1833] ss:$4 sm:$0xff] %v1730
  %v1853 = vld.sshfl [vmem:[#allocation1] sm:$0xff pattern:$0x73625140]
  %v1854 = vld.sshfl [vmem:[#allocation1 + $0x20] sm:$0xff pattern:$0x73625140]
  %1855 = vst [vmem:[#allocation1] ss:$4 sm:$0xff] %v1731
  %1856 = vst [vmem:[%s1823] ss:$4 sm:$0xff] %v1732
  %1857 = vst [vmem:[%s1825] ss:$4 sm:$0xff] %v1733
  %1858 = vst [vmem:[%s1827] ss:$4 sm:$0xff] %v1734
  %1859 = vst [vmem:[%s1829] ss:$4 sm:$0xff] %v1735
  %1860 = vst [vmem:[%s1831] ss:$4 sm:$0xff] %v1736
  %1861 = vst [vmem:[%s1833] ss:$4 sm:$0xff] %v1737
  %v1862 = vld.sshfl [vmem:[#allocation1] sm:$0xff pattern:$0x73625140]
  %v1863 = vld.sshfl [vmem:[#allocation1 + $0x20] sm:$0xff pattern:$0x73625140]
  %1864 = vst [vmem:[#allocation1] ss:$4 sm:$0xff] %v1738
  %1865 = vst [vmem:[%s1823] ss:$4 sm:$0xff] %v1739
  %1866 = vst [vmem:[%s1825] ss:$4 sm:$0xff] %v1740
  %1867 = vst [vmem:[%s1827] ss:$4 sm:$0xff] %v1741
  %1868 = vst [vmem:[%s1829] ss:$4 sm:$0xff] %v1742
  %1869 = vst [vmem:[%s1831] ss:$4 sm:$0xff] %v1743
  %1870 = vst [vmem:[%s1833] ss:$4 sm:$0xff] %v1744
  %v1871 = vld.sshfl [vmem:[#allocation1] sm:$0xff pattern:$0x73625140]
  %v1872 = vld.sshfl [vmem:[#allocation1 + $0x20] sm:$0xff pattern:$0x73625140]
  %1873 = vst [vmem:[#allocation1] ss:$4 sm:$0xff] %v1745
  %1874 = vst [vmem:[%s1823] ss:$4 sm:$0xff] %v1746
  %1875 = vst [vmem:[%s1825] ss:$4 sm:$0xff] %v1747
  %1876 = vst [vmem:[%s1827] ss:$4 sm:$0xff] %v1748
  %1877 = vst [vmem:[%s1829] ss:$4 sm:$0xff] %v1749
  %1878 = vst [vmem:[%s1831] ss:$4 sm:$0xff] %v1750
  %1879 = vst [vmem:[%s1833] ss:$4 sm:$0xff] %v1751
  %v1880 = vld.sshfl [vmem:[#allocation1] sm:$0xff pattern:$0x73625140]
  %v1881 = vld.sshfl [vmem:[#allocation1 + $0x20] sm:$0xff pattern:$0x73625140]
  %1882 = vst [vmem:[#allocation1] ss:$4 sm:$0xff] %v1752
  %1883 = vst [vmem:[%s1823] ss:$4 sm:$0xff] %v1753
  %1884 = vst [vmem:[%s1825] ss:$4 sm:$0xff] %v1754
  %1885 = vst [vmem:[%s1827] ss:$4 sm:$0xff] %v1755
  %1886 = vst [vmem:[%s1829] ss:$4 sm:$0xff] %v1756
  %1887 = vst [vmem:[%s1831] ss:$4 sm:$0xff] %v1757
  %1888 = vst [vmem:[%s1833] ss:$4 sm:$0xff] %v1758
  %v1889 = vld.sshfl [vmem:[#allocation1] sm:$0xff pattern:$0x73625140]
  %v1890 = vld.sshfl [vmem:[#allocation1 + $0x20] sm:$0xff pattern:$0x73625140]
  %1891 = vst [vmem:[#allocation1] ss:$4 sm:$0xff] %v1759
  %1892 = vst [vmem:[%s1823] ss:$4 sm:$0xff] %v1760
  %1893 = vst [vmem:[%s1825] ss:$4 sm:$0xff] %v1761
  %1894 = vst [vmem:[%s1827] ss:$4 sm:$0xff] %v1762
  %1895 = vst [vmem:[%s1829] ss:$4 sm:$0xff] %v1763
  %1896 = vst [vmem:[%s1831] ss:$4 sm:$0xff] %v1764
  %1897 = vst [vmem:[%s1833] ss:$4 sm:$0xff] %v1765
  %v1898 = vld.sshfl [vmem:[#allocation1] sm:$0xff pattern:$0x73625140]
  %v1899 = vld.sshfl [vmem:[#allocation1 + $0x20] sm:$0xff pattern:$0x73625140]
  %vm1916 = vcmask 1045504
  %v1917 = vsel %vm1916, %v1836, -inf
  %v1918 = vmax.f32 %v1835, %v1917
  %v1919 = vrot.slane %v1918, 4
  %v1920 = vmax.f32 %v1918, %v1919
  %v1921 = vrot.slane %v1920, 2
  %v1922 = vmax.f32 %v1920, %v1921
  %v1923 = vrot.slane %v1922, 1
  %v1924 = vmax.f32 %v1922, %v1923
  %v1925 = vsel %vm1916, %v1845, -inf
  %v1926 = vmax.f32 %v1844, %v1925
  %v1927 = vrot.slane %v1926, 4
  %v1928 = vmax.f32 %v1926, %v1927
  %v1929 = vrot.slane %v1928, 2
  %v1930 = vmax.f32 %v1928, %v1929
  %v1931 = vrot.slane %v1930, 1
  %v1932 = vmax.f32 %v1930, %v1931
  %v1933 = vsel %vm1916, %v1854, -inf
  %v1934 = vmax.f32 %v1853, %v1933
  %v1935 = vrot.slane %v1934, 4
  %v1936 = vmax.f32 %v1934, %v1935
  %v1937 = vrot.slane %v1936, 2
  %v1938 = vmax.f32 %v1936, %v1937
  %v1939 = vrot.slane %v1938, 1
  %v1940 = vmax.f32 %v1938, %v1939
  %v1941 = vsel %vm1916, %v1863, -inf
  %v1942 = vmax.f32 %v1862, %v1941
  %v1943 = vrot.slane %v1942, 4
  %v1944 = vmax.f32 %v1942, %v1943
  %v1945 = vrot.slane %v1944, 2
  %v1946 = vmax.f32 %v1944, %v1945
  %v1947 = vrot.slane %v1946, 1
  %v1948 = vmax.f32 %v1946, %v1947
  %v1949 = vsel %vm1916, %v1872, -inf
  %v1950 = vmax.f32 %v1871, %v1949
  %v1951 = vrot.slane %v1950, 4
  %v1952 = vmax.f32 %v1950, %v1951
  %v1953 = vrot.slane %v1952, 2
  %v1954 = vmax.f32 %v1952, %v1953
  %v1955 = vrot.slane %v1954, 1
  %v1956 = vmax.f32 %v1954, %v1955
  %v1957 = vsel %vm1916, %v1881, -inf
  %v1958 = vmax.f32 %v1880, %v1957
  %v1959 = vrot.slane %v1958, 4
  %v1960 = vmax.f32 %v1958, %v1959
  %v1961 = vrot.slane %v1960, 2
  %v1962 = vmax.f32 %v1960, %v1961
  %v1963 = vrot.slane %v1962, 1
  %v1964 = vmax.f32 %v1962, %v1963
  %v1965 = vsel %vm1916, %v1890, -inf
  %v1966 = vmax.f32 %v1889, %v1965
  %v1967 = vrot.slane %v1966, 4
  %v1968 = vmax.f32 %v1966, %v1967
  %v1969 = vrot.slane %v1968, 2
  %v1970 = vmax.f32 %v1968, %v1969
  %v1971 = vrot.slane %v1970, 1
  %v1972 = vmax.f32 %v1970, %v1971
  %v1973 = vsel %vm1916, %v1899, -inf
  %v1974 = vmax.f32 %v1898, %v1973
  %v1975 = vrot.slane %v1974, 4
  %v1976 = vmax.f32 %v1974, %v1975
  %v1977 = vrot.slane %v1976, 2
  %v1978 = vmax.f32 %v1976, %v1977
  %v1979 = vrot.slane %v1978, 1
  %v1980 = vmax.f32 %v1978, %v1979
  %v1981 = vpack.c.bf16 %v1924, %v1924
  %v1982 = vpack.c.bf16 %v1932, %v1932
  %v1983 = vpack.c.bf16 %v1940, %v1940
  %v1984 = vpack.c.bf16 %v1948, %v1948
  %v1985 = vpack.c.bf16 %v1956, %v1956
  %v1986 = vpack.c.bf16 %v1964, %v1964
  %v1987 = vpack.c.bf16 %v1972, %v1972
  %v1988 = vpack.c.bf16 %v1980, %v1980
  %v1989 = vld [vmem:[%s4] sm:$0xf]
  %v1990 = vld [vmem:[%s4 + $0x4] sm:$0xf]
  %v1991 = vld [vmem:[%s4 + $0x8] sm:$0xf]
  %v1992 = vld [vmem:[%s4 + $0xc] sm:$0xf]
  %v1993 = vld [vmem:[%s4 + $0x10] sm:$0xf]
  %v1994 = vld [vmem:[%s4 + $0x14] sm:$0xf]
  %v1995 = vld [vmem:[%s4 + $0x18] sm:$0xf]
  %v1996 = vld [vmem:[%s4 + $0x1c] sm:$0xf]
  %v1997 = vld [vmem:[%s4 + $0x20] sm:$0xf]
  %v1998 = vld [vmem:[%s4 + $0x24] sm:$0xf]
  %v1999 = vld [vmem:[%s4 + $0x28] sm:$0xf]
  %v2000 = vld [vmem:[%s4 + $0x2c] sm:$0xf]
  %v2001 = vld [vmem:[%s4 + $0x30] sm:$0xf]
  %v2002 = vld [vmem:[%s4 + $0x34] sm:$0xf]
  %v2003 = vld [vmem:[%s4 + $0x38] sm:$0xf]
  %v2004 = vld [vmem:[%s4 + $0x3c] sm:$0xf]
  %v2005 = vld [vmem:[%s5] sm:$0x1]
  %v2007 = vperm.slane %v2005, 0
  %v2017 = vunpack.c.l.b16 %v1981
  %v2018 = vunpack.c.l.b16 %v1982
  %v2019 = vunpack.c.l.b16 %v1983
  %v2020 = vunpack.c.l.b16 %v1984
  %v2021 = vunpack.c.l.b16 %v1985
  %v2022 = vunpack.c.l.b16 %v1986
  %v2023 = vunpack.c.l.b16 %v1987
  %v2024 = vunpack.c.l.b16 %v1988
  %v2025 = vsel %vm965, %v2018, %v2017
  %v2026 = vsel %vm969, %v2019, %v2025
  %v2027 = vsel %vm973, %v2020, %v2026
  %vm2028 = vcmask 1044484
  %v2029 = vsel %vm2028, %v2021, %v2027
  %vm2030 = vcmask 1045509
  %v2031 = vsel %vm2030, %v2022, %v2029
  %vm2032 = vcmask 1046534
  %v2033 = vsel %vm2032, %v2023, %v2031
  %vm2034 = vcmask 1047559
  %v2035 = vsel %vm2034, %v2024, %v2033
  %v2036 = vpack.c.b16 %v2035, %v2035
  %v2054 = vunpack.c.l.b16 %v1989
  %v2055 = vunpack.c.l.b16 %v1990
  %v2056 = vunpack.c.l.b16 %v1991
  %v2057 = vunpack.c.l.b16 %v1992
  %v2058 = vunpack.c.l.b16 %v1993
  %v2059 = vunpack.c.l.b16 %v1994
  %v2060 = vunpack.c.l.b16 %v1995
  %v2061 = vunpack.c.l.b16 %v1996
  %v2062 = vunpack.c.l.b16 %v1997
  %v2063 = vunpack.c.l.b16 %v1998
  %v2064 = vunpack.c.l.b16 %v1999
  %v2065 = vunpack.c.l.b16 %v2000
  %v2066 = vunpack.c.l.b16 %v2001
  %v2067 = vunpack.c.l.b16 %v2002
  %v2068 = vunpack.c.l.b16 %v2003
  %v2069 = vunpack.c.l.b16 %v2004
  %v2070 = vpack.c.b16 %v2055, %v2054
  %v2071 = vpack.c.b16 %v2057, %v2056
  %v2072 = vpack.c.b16 %v2059, %v2058
  %v2073 = vpack.c.b16 %v2061, %v2060
  %v2074 = vpack.c.b16 %v2063, %v2062
  %v2075 = vpack.c.b16 %v2065, %v2064
  %v2076 = vpack.c.b16 %v2067, %v2066
  %v2077 = vpack.c.b16 %v2069, %v2068
  %2086 = vmatpush.bf16.msra.mxu0 %v2077
  %2087 = vmatpush.bf16.msra.mxu0 %v2076
  %2088 = vmatpush.bf16.msra.mxu0 %v2075
  %2089 = vmatpush.bf16.msra.mxu0 %v2074
  %2090 = vmatpush.bf16.msra.mxu0 %v2073
  %2091 = vmatpush.bf16.msra.mxu0 %v2072
  %2092 = vmatpush.bf16.msra.mxu0 %v2071
  %2093 = vmatpush.bf16.msra.mxu0 %v2070
  %2094 = vmatmul.bf16.gmra.mxu0 %v2036
  %v2095 = vpop.f32.mrf.mxu0
  %v2096 = vadd.f32 %v2007, %v2095
  %v2097 = vpop.f32.mrf.mxu0
  %2098 = vdwg.mxu0
  %2099 = vst [vmem:[%s6] sm:$0xff] %v2096
  // Predicated region
  $region26: #{cnn_forward.1} parent=0 // pred_check
    _
  $region27: #{cnn_forward.1} parent=0 // pred_check_branch
    %2101 = sbr.rel (0) target = $region29
  $region28: #{cnn_forward.1} parent=0 // pred_region
    _
  $region29: #{cnn_forward.1} parent=0 // pred_fallthru
    _
  // Predicated region
  $region30: #{cnn_forward.1} parent=0 // pred_check
    _
  $region31: #{cnn_forward.1} parent=0 // pred_check_branch
    %2103 = sbr.rel (0) target = $region33
  $region32: #{cnn_forward.1} parent=0 // pred_region
    _
  $region33: #{cnn_forward.1} parent=0 // pred_fallthru
    _

</llo_original>
